<compile_context>
chip_gen: v7x
topology: tpu7x:2x2x1
jax: 0.10.0
libtpu: 0.0.40
codegen_flags: <defaults>
</compile_context>

<pallas_src>
import jax
import jax.numpy as jnp
from jax.experimental import pallas as pl
from jax.experimental.pallas import tpu as pltpu

# ---------------- model config (matches the PyTorch module) ----------------
N_EMBED    = 32
NUM_HEADS  = 4
HEAD_SIZE  = N_EMBED // NUM_HEADS
BLOCK_SIZE = 8            # sequence length T == block_size
NEG_INF    = -1e30        # additive mask value (safe stand-in for -inf)


# ---------------- fused MHA kernel ----------------
def mha_kernel(x_ref, wqkv_ref, wp_ref, bp_ref, mask_ref, o_ref, cat_ref):
    Bb, T, C = x_ref.shape
    x2 = x_ref[...].reshape(Bb * T, C)                       # merge leading dims only

    # fused q/k/v projection: one matmul (scale already folded into q columns)
    qkv = jnp.dot(x2, wqkv_ref[...], preferred_element_type=jnp.float32)  # (Bb*T, 3C)
    qkv3 = qkv.reshape(Bb, T, 3 * C)

    mask = mask_ref[...]                                     # (T, T) additive causal bias

    # Static unroll over heads; each iteration is batched over Bb via a single-batch-dim
    # einsum (the pattern Mosaic lowers natively). Head outputs go straight into the
    # (Bb*T, C) scratch at their column slice -> no concatenate / lane-shuffle copies.
    for h in range(NUM_HEADS):
        q = qkv3[:, :,          h * HEAD_SIZE:          (h + 1) * HEAD_SIZE]
        k = qkv3[:, :,     C +  h * HEAD_SIZE:     C +  (h + 1) * HEAD_SIZE]
        v = qkv3[:, :, 2 * C +  h * HEAD_SIZE: 2 * C +  (h + 1) * HEAD_SIZE]

        s = jnp.einsum("btd,bsd->bts", q, k, preferred_element_type=jnp.float32)
        s = s + mask                                         # causal: 0 / -1e30
        s = s - jnp.max(s, axis=-1, keepdims=True)
        p = jnp.exp(s)
        p = p * pl.reciprocal(jnp.sum(p, axis=-1, keepdims=True), approx=True)

        ho = jnp.einsum("bts,bsd->btd", p, v, preferred_element_type=jnp.float32)
        cat_ref[:, h * HEAD_SIZE:(h + 1) * HEAD_SIZE] = ho.reshape(Bb * T, HEAD_SIZE)

    # output projection (single matmul) + bias, residual-free (matches the module)
    out = jnp.dot(cat_ref[...], wp_ref[...], preferred_element_type=jnp.float32) + bp_ref[...]
    o_ref[...] = out.reshape(Bb, T, C)


# ---------------- wrapper ----------------
def multi_head_attention(x, wq, wk, wv, wp, bp, *, batch_blocks=1):
    """x: (B,T,C); wq/wk/wv/wp: (C,C); bp: (C,).  batch_blocks=2 on v7x (2 TCs)."""
    B, T, C = x.shape
    assert B % batch_blocks == 0
    Bb = B // batch_blocks

    # Host-side (free) parameter plumbing: fuse QKV, fold attention scale into Q columns.
    scale = HEAD_SIZE ** (-0.5)
    wqkv = jnp.concatenate([wq * scale, wk, wv], axis=1).astype(jnp.float32)   # (C, 3C)
    bp2 = bp.reshape(1, C).astype(jnp.float32)
    causal = jnp.tril(jnp.ones((T, T), dtype=bool))
    mask_bias = jnp.where(causal, 0.0, NEG_INF).astype(jnp.float32)            # (T, T)

    return pl.pallas_call(
        mha_kernel,
        out_shape=jax.ShapeDtypeStruct((B, T, C), jnp.float32),
        grid=(batch_blocks,),
        in_specs=[
            pl.BlockSpec((Bb, T, C), lambda i: (i, 0, 0)),
            pl.BlockSpec((C, 3 * C), lambda i: (0, 0)),
            pl.BlockSpec((C, C),     lambda i: (0, 0)),
            pl.BlockSpec((1, C),     lambda i: (0, 0)),
            pl.BlockSpec((T, T),     lambda i: (0, 0)),
        ],
        out_specs=pl.BlockSpec((Bb, T, C), lambda i: (i, 0, 0)),
        scratch_shapes=[pltpu.VMEM((Bb * T, C), jnp.float32)],   # concat-free head buffer
        compiler_params=pltpu.CompilerParams(dimension_semantics=("parallel",)),
    )(x, wqkv, wp.astype(jnp.float32), bp2, mask_bias)


# ---------------- pure-JAX reference (mirrors the PyTorch module) ----------------
def reference_mha(x, wq, wk, wv, wp, bp):
    q = x @ wq
    k = x @ wk
    v = x @ wv
    T = x.shape[1]
    mask = jnp.tril(jnp.ones((T, T), dtype=bool))
    outs = []
    for h in range(NUM_HEADS):
        sl = slice(h * HEAD_SIZE, (h + 1) * HEAD_SIZE)
        s = jnp.einsum("btd,bsd->bts", q[..., sl], k[..., sl]) * HEAD_SIZE ** (-0.5)
        s = jnp.where(mask, s, -jnp.inf)
        a = jax.nn.softmax(s, axis=-1)
        outs.append(jnp.einsum("bts,bsd->btd", a, v[..., sl]))
    return jnp.concatenate(outs, axis=-1) @ wp + bp


# ---------------- main ----------------
if __name__ == "__main__":
    key = jax.random.PRNGKey(0)
    kx, kq, kk, kv, kp, kb = jax.random.split(key, 6)

    B, T, C = 2, BLOCK_SIZE, N_EMBED
    x = jax.random.normal(kx, (B, T, C), jnp.float32)

    bound = 1.0 / (C ** 0.5)   # PyTorch Linear default init range
    wq = jax.random.uniform(kq, (C, C), jnp.float32, -bound, bound)
    wk = jax.random.uniform(kk, (C, C), jnp.float32, -bound, bound)
    wv = jax.random.uniform(kv, (C, C), jnp.float32, -bound, bound)
    wp = jax.random.uniform(kp, (C, C), jnp.float32, -bound, bound)
    bp = jax.random.uniform(kb, (C,),   jnp.float32, -bound, bound)

    out = multi_head_attention(x, wq, wk, wv, wp, bp)   # batch_blocks=2 on v7x
    out = jax.block_until_ready(out)

    ref = reference_mha(x, wq, wk, wv, wp, bp)
    assert out.shape == (B, T, C)
    # tolerance slightly loosened vs exact softmax because of pl.reciprocal(approx=True)
    assert jnp.allclose(out, ref, atol=1e-3, rtol=1e-3), "mismatch vs pure-JAX reference"
    print("KERNEL_OK")
</pallas_src>

<mosaic_0001>
module attributes {stable_mosaic.version = 11 : i64} {
  func.func @mha_kernel(%arg0: i32, %arg1: memref<2x8x32xf32, #tpu.memory_space<vmem>>, %arg2: memref<32x96xf32, #tpu.memory_space<vmem>>, %arg3: memref<32x32xf32, #tpu.memory_space<vmem>>, %arg4: memref<1x32xf32, #tpu.memory_space<vmem>>, %arg5: memref<8x8xf32, #tpu.memory_space<vmem>>, %arg6: memref<2x8x32xf32, #tpu.memory_space<vmem>>, %arg7: memref<16x32xf32, #tpu.memory_space<vmem>>) attributes {dimension_semantics = [#tpu.dimension_semantics<parallel>], iteration_bounds = array<i64: 1>, scalar_prefetch = 0 : i64, scratch_operands = 1 : i64, tpu.core_type = #tpu.core_type<tc>, window_params = [{transform_indices = @transform_0, window_bounds = array<i64: 2, 8, 32>}, {pipeline_mode = #tpu.pipeline_mode<synchronous>, transform_indices = @transform_1, window_bounds = array<i64: 32, 96>}, {pipeline_mode = #tpu.pipeline_mode<synchronous>, transform_indices = @transform_2, window_bounds = array<i64: 32, 32>}, {pipeline_mode = #tpu.pipeline_mode<synchronous>, transform_indices = @transform_3, window_bounds = array<i64: 1, 32>}, {pipeline_mode = #tpu.pipeline_mode<synchronous>, transform_indices = @transform_4, window_bounds = array<i64: 8, 8>}, {transform_indices = @transform_5, window_bounds = array<i64: 2, 8, 32>}]} {
    %c0 = arith.constant 0 : index
    %c0_0 = arith.constant 0 : index
    %c0_1 = arith.constant 0 : index
    %0 = vector.load %arg1[%c0, %c0_0, %c0_1] : memref<2x8x32xf32, #tpu.memory_space<vmem>>, vector<2x8x32xf32>
    %1 = vector.shape_cast %0 : vector<2x8x32xf32> to vector<16x32xf32>
    %c0_2 = arith.constant 0 : index
    %c0_3 = arith.constant 0 : index
    %2 = vector.load %arg2[%c0_2, %c0_3] : memref<32x96xf32, #tpu.memory_space<vmem>>, vector<32x96xf32>
    %cst = arith.constant dense<0.000000e+00> : vector<16x96xf32>
    %3 = tpu.matmul %1, %2, %cst {dimension_numbers = #tpu.dot_dimension_numbers<[1], [0], [0], [1], [0, 0, 1, 1], [], []>} : vector<16x32xf32>, vector<32x96xf32>, vector<16x96xf32> -> vector<16x96xf32>
    %4 = vector.shape_cast %3 : vector<16x96xf32> to vector<2x8x96xf32>
    %c0_4 = arith.constant 0 : index
    %c0_5 = arith.constant 0 : index
    %5 = vector.load %arg5[%c0_4, %c0_5] : memref<8x8xf32, #tpu.memory_space<vmem>>, vector<8x8xf32>
    %6 = vector.extract_strided_slice %4 {offsets = [0, 0, 0], sizes = [2, 8, 8], strides = [1, 1, 1]} : vector<2x8x96xf32> to vector<2x8x8xf32>
    %7 = vector.extract_strided_slice %4 {offsets = [0, 0, 32], sizes = [2, 8, 8], strides = [1, 1, 1]} : vector<2x8x96xf32> to vector<2x8x8xf32>
    %8 = vector.extract_strided_slice %4 {offsets = [0, 0, 64], sizes = [2, 8, 8], strides = [1, 1, 1]} : vector<2x8x96xf32> to vector<2x8x8xf32>
    "tpu.trace_start"() <{level = 10 : i32, message = "btd,bsd->bts"}> : () -> ()
    %cst_6 = arith.constant dense<0.000000e+00> : vector<2x8x8xf32>
    %9 = tpu.matmul %6, %7, %cst_6 {dimension_numbers = #tpu.dot_dimension_numbers<[2], [2], [1], [1], [0, 0, 0, 1, 1, 1], [0], [0]>} : vector<2x8x8xf32>, vector<2x8x8xf32>, vector<2x8x8xf32> -> vector<2x8x8xf32>
    "tpu.trace_stop"() : () -> ()
    %10 = vector.shape_cast %5 : vector<8x8xf32> to vector<1x8x8xf32>
    %11 = vector.broadcast %10 : vector<1x8x8xf32> to vector<2x8x8xf32>
    %12 = arith.addf %9, %11 : vector<2x8x8xf32>
    %cst_7 = arith.constant dense<0xFF800000> : vector<2x8xf32>
    %13 = vector.multi_reduction <maximumf>, %12, %cst_7 [2] : vector<2x8x8xf32> to vector<2x8xf32>
    %14 = vector.shape_cast %13 : vector<2x8xf32> to vector<2x8x1xf32>
    %15 = vector.broadcast %14 : vector<2x8x1xf32> to vector<2x8x8xf32>
    %16 = arith.subf %12, %15 : vector<2x8x8xf32>
    %17 = math.exp %16 : vector<2x8x8xf32>
    %cst_8 = arith.constant dense<0.000000e+00> : vector<2x8xf32>
    %18 = vector.multi_reduction <add>, %17, %cst_8 [2] : vector<2x8x8xf32> to vector<2x8xf32>
    %19 = vector.shape_cast %18 : vector<2x8xf32> to vector<2x8x1xf32>
    %20 = tpu.reciprocal %19 {approx = true} : vector<2x8x1xf32> -> vector<2x8x1xf32>
    %21 = vector.broadcast %20 : vector<2x8x1xf32> to vector<2x8x8xf32>
    %22 = arith.mulf %17, %21 : vector<2x8x8xf32>
    "tpu.trace_start"() <{level = 10 : i32, message = "bts,bsd->btd"}> : () -> ()
    %cst_9 = arith.constant dense<0.000000e+00> : vector<2x8x8xf32>
    %23 = tpu.matmul %22, %8, %cst_9 {dimension_numbers = #tpu.dot_dimension_numbers<[2], [1], [1], [2], [0, 0, 0, 1, 1, 2], [0], [0]>} : vector<2x8x8xf32>, vector<2x8x8xf32>, vector<2x8x8xf32> -> vector<2x8x8xf32>
    "tpu.trace_stop"() : () -> ()
    %24 = vector.shape_cast %23 : vector<2x8x8xf32> to vector<16x8xf32>
    %c0_10 = arith.constant 0 : index
    %c0_11 = arith.constant 0 : index
    %25 = vector.load %arg7[%c0_10, %c0_11] : memref<16x32xf32, #tpu.memory_space<vmem>>, vector<16x8xf32>
    tpu.vector_store %arg7[%c0_10, %c0_11], %24 {strides = array<i32>} : memref<16x32xf32, #tpu.memory_space<vmem>>, vector<16x8xf32>,
    %26 = vector.extract_strided_slice %4 {offsets = [0, 0, 8], sizes = [2, 8, 8], strides = [1, 1, 1]} : vector<2x8x96xf32> to vector<2x8x8xf32>
    %27 = vector.extract_strided_slice %4 {offsets = [0, 0, 40], sizes = [2, 8, 8], strides = [1, 1, 1]} : vector<2x8x96xf32> to vector<2x8x8xf32>
    %28 = vector.extract_strided_slice %4 {offsets = [0, 0, 72], sizes = [2, 8, 8], strides = [1, 1, 1]} : vector<2x8x96xf32> to vector<2x8x8xf32>
    "tpu.trace_start"() <{level = 10 : i32, message = "btd,bsd->bts"}> : () -> ()
    %cst_12 = arith.constant dense<0.000000e+00> : vector<2x8x8xf32>
    %29 = tpu.matmul %26, %27, %cst_12 {dimension_numbers = #tpu.dot_dimension_numbers<[2], [2], [1], [1], [0, 0, 0, 1, 1, 1], [0], [0]>} : vector<2x8x8xf32>, vector<2x8x8xf32>, vector<2x8x8xf32> -> vector<2x8x8xf32>
    "tpu.trace_stop"() : () -> ()
    %30 = vector.shape_cast %5 : vector<8x8xf32> to vector<1x8x8xf32>
    %31 = vector.broadcast %30 : vector<1x8x8xf32> to vector<2x8x8xf32>
    %32 = arith.addf %29, %31 : vector<2x8x8xf32>
    %cst_13 = arith.constant dense<0xFF800000> : vector<2x8xf32>
    %33 = vector.multi_reduction <maximumf>, %32, %cst_13 [2] : vector<2x8x8xf32> to vector<2x8xf32>
    %34 = vector.shape_cast %33 : vector<2x8xf32> to vector<2x8x1xf32>
    %35 = vector.broadcast %34 : vector<2x8x1xf32> to vector<2x8x8xf32>
    %36 = arith.subf %32, %35 : vector<2x8x8xf32>
    %37 = math.exp %36 : vector<2x8x8xf32>
    %cst_14 = arith.constant dense<0.000000e+00> : vector<2x8xf32>
    %38 = vector.multi_reduction <add>, %37, %cst_14 [2] : vector<2x8x8xf32> to vector<2x8xf32>
    %39 = vector.shape_cast %38 : vector<2x8xf32> to vector<2x8x1xf32>
    %40 = tpu.reciprocal %39 {approx = true} : vector<2x8x1xf32> -> vector<2x8x1xf32>
    %41 = vector.broadcast %40 : vector<2x8x1xf32> to vector<2x8x8xf32>
    %42 = arith.mulf %37, %41 : vector<2x8x8xf32>
    "tpu.trace_start"() <{level = 10 : i32, message = "bts,bsd->btd"}> : () -> ()
    %cst_15 = arith.constant dense<0.000000e+00> : vector<2x8x8xf32>
    %43 = tpu.matmul %42, %28, %cst_15 {dimension_numbers = #tpu.dot_dimension_numbers<[2], [1], [1], [2], [0, 0, 0, 1, 1, 2], [0], [0]>} : vector<2x8x8xf32>, vector<2x8x8xf32>, vector<2x8x8xf32> -> vector<2x8x8xf32>
    "tpu.trace_stop"() : () -> ()
    %44 = vector.shape_cast %43 : vector<2x8x8xf32> to vector<16x8xf32>
    %c0_16 = arith.constant 0 : index
    %c8 = arith.constant 8 : index
    %45 = vector.load %arg7[%c0_16, %c8] : memref<16x32xf32, #tpu.memory_space<vmem>>, vector<16x8xf32>
    tpu.vector_store %arg7[%c0_16, %c8], %44 {strides = array<i32>} : memref<16x32xf32, #tpu.memory_space<vmem>>, vector<16x8xf32>,
    %46 = vector.extract_strided_slice %4 {offsets = [0, 0, 16], sizes = [2, 8, 8], strides = [1, 1, 1]} : vector<2x8x96xf32> to vector<2x8x8xf32>
    %47 = vector.extract_strided_slice %4 {offsets = [0, 0, 48], sizes = [2, 8, 8], strides = [1, 1, 1]} : vector<2x8x96xf32> to vector<2x8x8xf32>
    %48 = vector.extract_strided_slice %4 {offsets = [0, 0, 80], sizes = [2, 8, 8], strides = [1, 1, 1]} : vector<2x8x96xf32> to vector<2x8x8xf32>
    "tpu.trace_start"() <{level = 10 : i32, message = "btd,bsd->bts"}> : () -> ()
    %cst_17 = arith.constant dense<0.000000e+00> : vector<2x8x8xf32>
    %49 = tpu.matmul %46, %47, %cst_17 {dimension_numbers = #tpu.dot_dimension_numbers<[2], [2], [1], [1], [0, 0, 0, 1, 1, 1], [0], [0]>} : vector<2x8x8xf32>, vector<2x8x8xf32>, vector<2x8x8xf32> -> vector<2x8x8xf32>
    "tpu.trace_stop"() : () -> ()
    %50 = vector.shape_cast %5 : vector<8x8xf32> to vector<1x8x8xf32>
    %51 = vector.broadcast %50 : vector<1x8x8xf32> to vector<2x8x8xf32>
    %52 = arith.addf %49, %51 : vector<2x8x8xf32>
    %cst_18 = arith.constant dense<0xFF800000> : vector<2x8xf32>
    %53 = vector.multi_reduction <maximumf>, %52, %cst_18 [2] : vector<2x8x8xf32> to vector<2x8xf32>
    %54 = vector.shape_cast %53 : vector<2x8xf32> to vector<2x8x1xf32>
    %55 = vector.broadcast %54 : vector<2x8x1xf32> to vector<2x8x8xf32>
    %56 = arith.subf %52, %55 : vector<2x8x8xf32>
    %57 = math.exp %56 : vector<2x8x8xf32>
    %cst_19 = arith.constant dense<0.000000e+00> : vector<2x8xf32>
    %58 = vector.multi_reduction <add>, %57, %cst_19 [2] : vector<2x8x8xf32> to vector<2x8xf32>
    %59 = vector.shape_cast %58 : vector<2x8xf32> to vector<2x8x1xf32>
    %60 = tpu.reciprocal %59 {approx = true} : vector<2x8x1xf32> -> vector<2x8x1xf32>
    %61 = vector.broadcast %60 : vector<2x8x1xf32> to vector<2x8x8xf32>
    %62 = arith.mulf %57, %61 : vector<2x8x8xf32>
    "tpu.trace_start"() <{level = 10 : i32, message = "bts,bsd->btd"}> : () -> ()
    %cst_20 = arith.constant dense<0.000000e+00> : vector<2x8x8xf32>
    %63 = tpu.matmul %62, %48, %cst_20 {dimension_numbers = #tpu.dot_dimension_numbers<[2], [1], [1], [2], [0, 0, 0, 1, 1, 2], [0], [0]>} : vector<2x8x8xf32>, vector<2x8x8xf32>, vector<2x8x8xf32> -> vector<2x8x8xf32>
    "tpu.trace_stop"() : () -> ()
    %64 = vector.shape_cast %63 : vector<2x8x8xf32> to vector<16x8xf32>
    %c0_21 = arith.constant 0 : index
    %c16 = arith.constant 16 : index
    %65 = vector.load %arg7[%c0_21, %c16] : memref<16x32xf32, #tpu.memory_space<vmem>>, vector<16x8xf32>
    tpu.vector_store %arg7[%c0_21, %c16], %64 {strides = array<i32>} : memref<16x32xf32, #tpu.memory_space<vmem>>, vector<16x8xf32>,
    %66 = vector.extract_strided_slice %4 {offsets = [0, 0, 24], sizes = [2, 8, 8], strides = [1, 1, 1]} : vector<2x8x96xf32> to vector<2x8x8xf32>
    %67 = vector.extract_strided_slice %4 {offsets = [0, 0, 56], sizes = [2, 8, 8], strides = [1, 1, 1]} : vector<2x8x96xf32> to vector<2x8x8xf32>
    %68 = vector.extract_strided_slice %4 {offsets = [0, 0, 88], sizes = [2, 8, 8], strides = [1, 1, 1]} : vector<2x8x96xf32> to vector<2x8x8xf32>
    "tpu.trace_start"() <{level = 10 : i32, message = "btd,bsd->bts"}> : () -> ()
    %cst_22 = arith.constant dense<0.000000e+00> : vector<2x8x8xf32>
    %69 = tpu.matmul %66, %67, %cst_22 {dimension_numbers = #tpu.dot_dimension_numbers<[2], [2], [1], [1], [0, 0, 0, 1, 1, 1], [0], [0]>} : vector<2x8x8xf32>, vector<2x8x8xf32>, vector<2x8x8xf32> -> vector<2x8x8xf32>
    "tpu.trace_stop"() : () -> ()
    %70 = vector.shape_cast %5 : vector<8x8xf32> to vector<1x8x8xf32>
    %71 = vector.broadcast %70 : vector<1x8x8xf32> to vector<2x8x8xf32>
    %72 = arith.addf %69, %71 : vector<2x8x8xf32>
    %cst_23 = arith.constant dense<0xFF800000> : vector<2x8xf32>
    %73 = vector.multi_reduction <maximumf>, %72, %cst_23 [2] : vector<2x8x8xf32> to vector<2x8xf32>
    %74 = vector.shape_cast %73 : vector<2x8xf32> to vector<2x8x1xf32>
    %75 = vector.broadcast %74 : vector<2x8x1xf32> to vector<2x8x8xf32>
    %76 = arith.subf %72, %75 : vector<2x8x8xf32>
    %77 = math.exp %76 : vector<2x8x8xf32>
    %cst_24 = arith.constant dense<0.000000e+00> : vector<2x8xf32>
    %78 = vector.multi_reduction <add>, %77, %cst_24 [2] : vector<2x8x8xf32> to vector<2x8xf32>
    %79 = vector.shape_cast %78 : vector<2x8xf32> to vector<2x8x1xf32>
    %80 = tpu.reciprocal %79 {approx = true} : vector<2x8x1xf32> -> vector<2x8x1xf32>
    %81 = vector.broadcast %80 : vector<2x8x1xf32> to vector<2x8x8xf32>
    %82 = arith.mulf %77, %81 : vector<2x8x8xf32>
    "tpu.trace_start"() <{level = 10 : i32, message = "bts,bsd->btd"}> : () -> ()
    %cst_25 = arith.constant dense<0.000000e+00> : vector<2x8x8xf32>
    %83 = tpu.matmul %82, %68, %cst_25 {dimension_numbers = #tpu.dot_dimension_numbers<[2], [1], [1], [2], [0, 0, 0, 1, 1, 2], [0], [0]>} : vector<2x8x8xf32>, vector<2x8x8xf32>, vector<2x8x8xf32> -> vector<2x8x8xf32>
    "tpu.trace_stop"() : () -> ()
    %84 = vector.shape_cast %83 : vector<2x8x8xf32> to vector<16x8xf32>
    %c0_26 = arith.constant 0 : index
    %c24 = arith.constant 24 : index
    %85 = vector.load %arg7[%c0_26, %c24] : memref<16x32xf32, #tpu.memory_space<vmem>>, vector<16x8xf32>
    tpu.vector_store %arg7[%c0_26, %c24], %84 {strides = array<i32>} : memref<16x32xf32, #tpu.memory_space<vmem>>, vector<16x8xf32>,
    %c0_27 = arith.constant 0 : index
    %c0_28 = arith.constant 0 : index
    %86 = vector.load %arg7[%c0_27, %c0_28] : memref<16x32xf32, #tpu.memory_space<vmem>>, vector<16x32xf32>
    %c0_29 = arith.constant 0 : index
    %c0_30 = arith.constant 0 : index
    %87 = vector.load %arg3[%c0_29, %c0_30] : memref<32x32xf32, #tpu.memory_space<vmem>>, vector<32x32xf32>
    %cst_31 = arith.constant dense<0.000000e+00> : vector<16x32xf32>
    %88 = tpu.matmul %86, %87, %cst_31 {dimension_numbers = #tpu.dot_dimension_numbers<[1], [0], [0], [1], [0, 0, 1, 1], [], []>} : vector<16x32xf32>, vector<32x32xf32>, vector<16x32xf32> -> vector<16x32xf32>
    %c0_32 = arith.constant 0 : index
    %c0_33 = arith.constant 0 : index
    %89 = vector.load %arg4[%c0_32, %c0_33] : memref<1x32xf32, #tpu.memory_space<vmem>>, vector<1x32xf32>
    %90 = vector.broadcast %89 : vector<1x32xf32> to vector<16x32xf32>
    %91 = arith.addf %88, %90 : vector<16x32xf32>
    %92 = vector.shape_cast %91 : vector<16x32xf32> to vector<2x8x32xf32>
    %c0_34 = arith.constant 0 : index
    %c0_35 = arith.constant 0 : index
    %c0_36 = arith.constant 0 : index
    %93 = vector.load %arg6[%c0_34, %c0_35, %c0_36] : memref<2x8x32xf32, #tpu.memory_space<vmem>>, vector<2x8x32xf32>
    tpu.vector_store %arg6[%c0_34, %c0_35, %c0_36], %92 {strides = array<i32>} : memref<2x8x32xf32, #tpu.memory_space<vmem>>, vector<2x8x32xf32>,
    return
  }
  func.func @transform_0(%arg0: i32) -> (i32, i32, i32) {
    %c0_i32 = arith.constant 0 : i32
    %c0_i32_0 = arith.constant 0 : i32
    %c0_i32_1 = arith.constant 0 : i32
    return %arg0, %c0_i32, %c0_i32_0 : i32, i32, i32
  }
  func.func @transform_1(%arg0: i32) -> (i32, i32) {
    %c0_i32 = arith.constant 0 : i32
    %c0_i32_0 = arith.constant 0 : i32
    %c0_i32_1 = arith.constant 0 : i32
    return %c0_i32, %c0_i32_0 : i32, i32
  }
  func.func @transform_2(%arg0: i32) -> (i32, i32) {
    %c0_i32 = arith.constant 0 : i32
    %c0_i32_0 = arith.constant 0 : i32
    %c0_i32_1 = arith.constant 0 : i32
    return %c0_i32, %c0_i32_0 : i32, i32
  }
  func.func @transform_3(%arg0: i32) -> (i32, i32) {
    %c0_i32 = arith.constant 0 : i32
    %c0_i32_0 = arith.constant 0 : i32
    %c0_i32_1 = arith.constant 0 : i32
    return %c0_i32, %c0_i32_0 : i32, i32
  }
  func.func @transform_4(%arg0: i32) -> (i32, i32) {
    %c0_i32 = arith.constant 0 : i32
    %c0_i32_0 = arith.constant 0 : i32
    %c0_i32_1 = arith.constant 0 : i32
    return %c0_i32, %c0_i32_0 : i32, i32
  }
  func.func @transform_5(%arg0: i32) -> (i32, i32, i32) {
    %c0_i32 = arith.constant 0 : i32
    %c0_i32_0 = arith.constant 0 : i32
    %c0_i32_1 = arith.constant 0 : i32
    return %arg0, %c0_i32, %c0_i32_0 : i32, i32, i32
  }
}

</mosaic_0001>

<llo_original>
// kernel: tpu_custom_call.1
$region0: #{tpu_custom_call.1}
  #allocation0 [shape = 'u32[]', space=smem, size = 0x4, offset = 0x4, fixed_abs, tag = 'smem constant byte address 0x4 - core index']
  #allocation1 [shape = 'u32[144,128]{1,0:T(1,128)}', space=vmem, size = 0x12000, scoped, tag = 'internal scratch']
  #allocation2 [shape = 'f32[16,32]{1,0:T(8,128)}', space=vmem, size = 0x2000, scoped, tag = 'scratch operand']
  %s0 = inlined_call_operand.hbm [shape: f32[2,8,32], index: 0, kind: input, shape index: {}]
  %s1 = inlined_call_operand.hbm [shape: f32[32,96], index: 1, kind: input, shape index: {}]
  %s2 = inlined_call_operand.hbm [shape: f32[32,32], index: 2, kind: input, shape index: {}]
  %s3 = inlined_call_operand.vmem [shape: f32[1,32], index: 3, kind: input, shape index: {}]
  %s4 = inlined_call_operand.vmem [shape: f32[8,8], index: 4, kind: input, shape index: {}]
  %s5 = inlined_call_operand.hbm [shape: f32[2,8,32], index: 5, kind: output, shape index: {}]
  %s6 = sld [smem:[#allocation0]]
  $region42: #{tpu_custom_call.1} parent=0
    _
  %s8 = ssub.s32 1, %s6
  %s9 = scalar_select 0, %s8, %s6
  $region1: #{tpu_custom_call.1} parent=0
    #allocation3 [shape = 'u8[8192]{0}', space=vmem, size = 0x2000, scoped, tag = 'input window, operand 0, single buffered']
    #allocation4 [shape = 's32[1]{0}', space=sflag, size = 0x4, scoped, tag = 'scoped memory for tpu_custom_call.1']
    #allocation5 [shape = 's32[1]{0}', space=sflag, size = 0x4, scoped, tag = 'scoped memory for tpu_custom_call.1']
    #allocation6 [shape = 'u8[16384]{0}', space=vmem, size = 0x4000, scoped, tag = 'input window, operand 1, single buffered']
    #allocation7 [shape = 's32[1]{0}', space=sflag, size = 0x4, scoped, tag = 'scoped memory for tpu_custom_call.1']
    #allocation8 [shape = 'u8[16384]{0}', space=vmem, size = 0x4000, scoped, tag = 'input window, operand 2, single buffered']
    #allocation9 [shape = 'u8[8192]{0}', space=vmem, size = 0x2000, scoped, tag = 'output window, operand 0, single buffered']
    %10 = vsyncpa [#allocation4], 0
    %11 = vsyncpa [#allocation7], 0
    %12 = vsyncpa [#allocation5], 0
    // Predicated region
    $region2: #{tpu_custom_call.1} parent=1 // pred_check
      _
    $region3: #{tpu_custom_call.1} parent=1 // pred_check_branch
      %14 = sbr.rel (0) target = $region5
    $region4: #{tpu_custom_call.1} parent=1 // pred_region
      %s16 = ssub.s32 256, 256
      %17 = vsyncadd [#allocation4], %s16
      %s18 = sshll.u32 [#allocation3], 4
      %s19 = int_to_ptr.vmem [resolvable:$true] %s18
      %24 = dma.hbm_to_vmem [thread:$0]  %s0, 256, %s19, [#allocation4], 128, 128, 8
    $region5: #{tpu_custom_call.1} parent=1 // pred_fallthru
      _
    // Predicated region
    $region6: #{tpu_custom_call.1} parent=1 // pred_check
      _
    $region7: #{tpu_custom_call.1} parent=1 // pred_check_branch
      %26 = sbr.rel (0) target = $region9
    $region8: #{tpu_custom_call.1} parent=1 // pred_region
      %s28 = ssub.s32 512, 512
      %29 = vsyncadd [#allocation7], %s28
      %s30 = sshll.u32 [#allocation6], 4
      %s31 = int_to_ptr.vmem [resolvable:$true] %s30
      %36 = dma.hbm_to_vmem [thread:$0]  %s1, 512, %s31, [#allocation7], 128, 128, 8
    $region9: #{tpu_custom_call.1} parent=1 // pred_fallthru
      _
    // Predicated region
    $region10: #{tpu_custom_call.1} parent=1 // pred_check
      _
    $region11: #{tpu_custom_call.1} parent=1 // pred_check_branch
      %38 = sbr.rel (0) target = $region13
    $region12: #{tpu_custom_call.1} parent=1 // pred_region
      %s40 = ssub.s32 512, 512
      %41 = vsyncadd [#allocation7], %s40
      %s42 = sshll.u32 [#allocation8], 4
      %s43 = int_to_ptr.vmem [resolvable:$true] %s42
      %48 = dma.hbm_to_vmem [thread:$0]  %s2, 512, %s43, [#allocation7], 128, 128, 8
    $region13: #{tpu_custom_call.1} parent=1 // pred_fallthru
      _
    // Predicated region
    $region14: #{tpu_custom_call.1} parent=1 // pred_check
      _
    $region15: #{tpu_custom_call.1} parent=1 // pred_check_branch
      %50 = sbr.rel (0) target = $region17
    $region16: #{tpu_custom_call.1} parent=1 // pred_region
      _
    $region17: #{tpu_custom_call.1} parent=1 // pred_fallthru
      _
    // Predicated region
    $region18: #{tpu_custom_call.1} parent=1 // pred_check
      _
    $region19: #{tpu_custom_call.1} parent=1 // pred_check_branch
      %52 = sbr.rel (0) target = $region21
    $region20: #{tpu_custom_call.1} parent=1 // pred_region
      _
    $region21: #{tpu_custom_call.1} parent=1 // pred_fallthru
      _
    // Predicated region
    $region22: #{tpu_custom_call.1} parent=1 // pred_check
      _
    $region23: #{tpu_custom_call.1} parent=1 // pred_check_branch
      %54 = sbr.rel (0) target = $region25
    $region24: #{tpu_custom_call.1} parent=1 // pred_region
      %55 = dma.done [#allocation4], 256
    $region25: #{tpu_custom_call.1} parent=1 // pred_fallthru
      _
    // Predicated region
    $region26: #{tpu_custom_call.1} parent=1 // pred_check
      _
    $region27: #{tpu_custom_call.1} parent=1 // pred_check_branch
      %57 = sbr.rel (0) target = $region29
    $region28: #{tpu_custom_call.1} parent=1 // pred_region
      %58 = dma.done [#allocation7], 512
    $region29: #{tpu_custom_call.1} parent=1 // pred_fallthru
      _
    // Predicated region
    $region30: #{tpu_custom_call.1} parent=1 // pred_check
      _
    $region31: #{tpu_custom_call.1} parent=1 // pred_check_branch
      %60 = sbr.rel (0) target = $region33
    $region32: #{tpu_custom_call.1} parent=1 // pred_region
      %61 = dma.done [#allocation7], 512
    $region33: #{tpu_custom_call.1} parent=1 // pred_fallthru
      _
    %v62 = vld [vmem:[#allocation3] sm:$0xff]
    %v63 = vld [vmem:[#allocation3 + $0x8] sm:$0xff]
    %v64 = vld [vmem:[#allocation6] sm:$0xff]
    %v65 = vld [vmem:[#allocation6 + $0x8] sm:$0xff]
    %v66 = vld [vmem:[#allocation6 + $0x10] sm:$0xff]
    %v67 = vld [vmem:[#allocation6 + $0x18] sm:$0xff]
    %vm68 = vcmask 261120
    %v70 = vsel %vm68, %v62, 0
    %v73 = vsel %vm68, %v63, 0
    %75 = vmatprep.subr.mxu0 0.0
    %76 = vmatpush1.msra.mxu0 %v64
    %77 = vmatprep.subr.mxu0 0.0
    %78 = vmatpush1.msra.mxu0 %v65
    %79 = vmatprep.subr.mxu0 0.0
    %80 = vmatpush1.msra.mxu0 %v66
    %81 = vmatprep.subr.mxu0 0.0
    %82 = vmatpush1.msra.mxu0 %v67
    %83 = vmatprep.subr.mxu0 0.0
    %84 = vmatpush1.msra.mxu0 0.0
    %85 = vmatprep.subr.mxu0 0.0
    %86 = vmatpush1.msra.mxu0 0.0
    %87 = vmatprep.subr.mxu0 0.0
    %88 = vmatpush1.msra.mxu0 0.0
    %89 = vmatprep.subr.mxu0 0.0
    %90 = vmatpush1.msra.mxu0 0.0
    %91 = vmatprep.subr.mxu0 0.0
    %92 = vmatpush1.msra.mxu0 0.0
    %93 = vmatprep.subr.mxu0 0.0
    %94 = vmatpush1.msra.mxu0 0.0
    %95 = vmatprep.subr.mxu0 0.0
    %96 = vmatpush1.msra.mxu0 0.0
    %97 = vmatprep.subr.mxu0 0.0
    %98 = vmatpush1.msra.mxu0 0.0
    %99 = vmatprep.subr.mxu0 0.0
    %100 = vmatpush1.msra.mxu0 0.0
    %101 = vmatprep.subr.mxu0 0.0
    %102 = vmatpush1.msra.mxu0 0.0
    %103 = vmatprep.subr.mxu0 0.0
    %104 = vmatpush1.msra.mxu0 0.0
    %105 = vmatprep.subr.mxu0 0.0
    %106 = vmatpush1.msra.mxu0 0.0
    %107 = vmatprep.subr.mxu0 0.0
    %108 = vmatpush1.msra.mxu0 0.0
    %109 = vmatprep.subr.mxu0 0.0
    %110 = vmatpush1.msra.mxu0 0.0
    %111 = vmatprep.subr.mxu0 0.0
    %112 = vmatpush1.msra.mxu0 0.0
    %113 = vmatprep.subr.mxu0 0.0
    %114 = vmatpush1.msra.mxu0 0.0
    %115 = vmatprep.subr.mxu0 0.0
    %116 = vmatpush1.msra.mxu0 0.0
    %117 = vmatprep.subr.mxu0 0.0
    %118 = vmatpush1.msra.mxu0 0.0
    %119 = vmatprep.subr.mxu0 0.0
    %120 = vmatpush1.msra.mxu0 0.0
    %121 = vmatprep.subr.mxu0 0.0
    %122 = vmatpush1.msra.mxu0 0.0
    %123 = vmatprep.subr.mxu0 0.0
    %124 = vmatpush1.msra.mxu0 0.0
    %125 = vmatprep.subr.mxu0 0.0
    %126 = vmatpush1.msra.mxu0 0.0
    %127 = vmatprep.subr.mxu0 0.0
    %128 = vmatpush1.msra.mxu0 0.0
    %129 = vmatprep.subr.mxu0 0.0
    %130 = vmatpush1.msra.mxu0 0.0
    %131 = vmatprep.subr.mxu0 0.0
    %132 = vmatpush1.msra.mxu0 0.0
    %133 = vmatprep.subr.mxu0 0.0
    %134 = vmatpush1.msra.mxu0 0.0
    %135 = vmatprep.subr.mxu0 0.0
    %136 = vmatpush1.msra.mxu0 0.0
    %137 = vmatprep.subr.mxu0 0.0
    %138 = vmatpush1.msra.mxu0 0.0
    %139 = vmatprep.mubr.f32.mxu0 0.0
    %140 = vmatmul.mubr.f32.gmra.mrb[0].mxu0 %v70
    %v141 = vpop.f32.mrb[0].mxu0
    %v142 = vadd.f32 0.0, %v141
    %v143 = vpop.f32.mrb[0].mxu0
    %144 = vmatprep.mubr.f32.mxu0 0.0
    %145 = vmatmul.mubr.f32.gmra.mrb[0].mxu0 %v73
    %v146 = vpop.f32.mrb[0].mxu0
    %v147 = vadd.f32 0.0, %v146
    %v148 = vpop.f32.mrb[0].mxu0
    %149 = vdwg.mxu0
    %v150 = vld [vmem:[%s4] sm:$0xff]
    %152 = vrot.lane.b32.xlu0 %v142, 96
    %v153 = vpop.permute.xlu0 %152
    %vm154 = vcmask 64512
    %v155 = vsel %vm154, %v142, 0
    %v157 = vsel %vm154, %v153, 0
    %159 = vmatprep.subr.mxu0 0.0
    %160 = vmatpush1.xpose.msra.mxu0 %v157
    %161 = vmatprep.subr.mxu0 0.0
    %162 = vmatpush1.xpose.msra.mxu0 0.0
    %163 = vmatprep.subr.mxu0 0.0
    %164 = vmatpush1.xpose.msra.mxu0 0.0
    %165 = vmatprep.subr.mxu0 0.0
    %166 = vmatpush1.xpose.msra.mxu0 0.0
    %167 = vmatprep.subr.mxu0 0.0
    %168 = vmatpush1.xpose.msra.mxu0 0.0
    %169 = vmatprep.subr.mxu0 0.0
    %170 = vmatpush1.xpose.msra.mxu0 0.0
    %171 = vmatprep.subr.mxu0 0.0
    %172 = vmatpush1.xpose.msra.mxu0 0.0
    %173 = vmatprep.subr.mxu0 0.0
    %174 = vmatpush1.xpose.msra.mxu0 0.0
    %175 = vmatprep.subr.mxu0 0.0
    %176 = vmatpush1.xpose.msra.mxu0 0.0
    %177 = vmatprep.subr.mxu0 0.0
    %178 = vmatpush1.xpose.msra.mxu0 0.0
    %179 = vmatprep.subr.mxu0 0.0
    %180 = vmatpush1.xpose.msra.mxu0 0.0
    %181 = vmatprep.subr.mxu0 0.0
    %182 = vmatpush1.xpose.msra.mxu0 0.0
    %183 = vmatprep.subr.mxu0 0.0
    %184 = vmatpush1.xpose.msra.mxu0 0.0
    %185 = vmatprep.subr.mxu0 0.0
    %186 = vmatpush1.xpose.msra.mxu0 0.0
    %187 = vmatprep.subr.mxu0 0.0
    %188 = vmatpush1.xpose.msra.mxu0 0.0
    %189 = vmatprep.subr.mxu0 0.0
    %190 = vmatpush1.xpose.msra.mxu0 0.0
    %191 = vmatprep.subr.mxu0 0.0
    %192 = vmatpush1.xpose.msra.mxu0 0.0
    %193 = vmatprep.subr.mxu0 0.0
    %194 = vmatpush1.xpose.msra.mxu0 0.0
    %195 = vmatprep.subr.mxu0 0.0
    %196 = vmatpush1.xpose.msra.mxu0 0.0
    %197 = vmatprep.subr.mxu0 0.0
    %198 = vmatpush1.xpose.msra.mxu0 0.0
    %199 = vmatprep.subr.mxu0 0.0
    %200 = vmatpush1.xpose.msra.mxu0 0.0
    %201 = vmatprep.subr.mxu0 0.0
    %202 = vmatpush1.xpose.msra.mxu0 0.0
    %203 = vmatprep.subr.mxu0 0.0
    %204 = vmatpush1.xpose.msra.mxu0 0.0
    %205 = vmatprep.subr.mxu0 0.0
    %206 = vmatpush1.xpose.msra.mxu0 0.0
    %207 = vmatprep.subr.mxu0 0.0
    %208 = vmatpush1.xpose.msra.mxu0 0.0
    %209 = vmatprep.subr.mxu0 0.0
    %210 = vmatpush1.xpose.msra.mxu0 0.0
    %211 = vmatprep.subr.mxu0 0.0
    %212 = vmatpush1.xpose.msra.mxu0 0.0
    %213 = vmatprep.subr.mxu0 0.0
    %214 = vmatpush1.xpose.msra.mxu0 0.0
    %215 = vmatprep.subr.mxu0 0.0
    %216 = vmatpush1.xpose.msra.mxu0 0.0
    %217 = vmatprep.subr.mxu0 0.0
    %218 = vmatpush1.xpose.msra.mxu0 0.0
    %219 = vmatprep.subr.mxu0 0.0
    %220 = vmatpush1.xpose.msra.mxu0 0.0
    %221 = vmatprep.subr.mxu0 0.0
    %222 = vmatpush1.xpose.msra.mxu0 0.0
    %223 = vmatprep.mubr.f32.mxu0 0.0
    %224 = vmatmul.mubr.f32.gmra.mrb[0].mxu0 %v155
    %v225 = vpop.f32.mrb[0].mxu0
    %v226 = vadd.f32 %v150, %v225
    %v227 = vpop.f32.mrb[0].mxu0
    %228 = vdwg.mxu0
    %230 = vrot.lane.b32.xlu0 %v147, 96
    %v231 = vpop.permute.xlu0 %230
    %v232 = vsel %vm154, %v147, 0
    %v234 = vsel %vm154, %v231, 0
    %236 = vmatprep.subr.mxu0 0.0
    %237 = vmatpush1.xpose.msra.mxu0 %v234
    %238 = vmatprep.subr.mxu0 0.0
    %239 = vmatpush1.xpose.msra.mxu0 0.0
    %240 = vmatprep.subr.mxu0 0.0
    %241 = vmatpush1.xpose.msra.mxu0 0.0
    %242 = vmatprep.subr.mxu0 0.0
    %243 = vmatpush1.xpose.msra.mxu0 0.0
    %244 = vmatprep.subr.mxu0 0.0
    %245 = vmatpush1.xpose.msra.mxu0 0.0
    %246 = vmatprep.subr.mxu0 0.0
    %247 = vmatpush1.xpose.msra.mxu0 0.0
    %248 = vmatprep.subr.mxu0 0.0
    %249 = vmatpush1.xpose.msra.mxu0 0.0
    %250 = vmatprep.subr.mxu0 0.0
    %251 = vmatpush1.xpose.msra.mxu0 0.0
    %252 = vmatprep.subr.mxu0 0.0
    %253 = vmatpush1.xpose.msra.mxu0 0.0
    %254 = vmatprep.subr.mxu0 0.0
    %255 = vmatpush1.xpose.msra.mxu0 0.0
    %256 = vmatprep.subr.mxu0 0.0
    %257 = vmatpush1.xpose.msra.mxu0 0.0
    %258 = vmatprep.subr.mxu0 0.0
    %259 = vmatpush1.xpose.msra.mxu0 0.0
    %260 = vmatprep.subr.mxu0 0.0
    %261 = vmatpush1.xpose.msra.mxu0 0.0
    %262 = vmatprep.subr.mxu0 0.0
    %263 = vmatpush1.xpose.msra.mxu0 0.0
    %264 = vmatprep.subr.mxu0 0.0
    %265 = vmatpush1.xpose.msra.mxu0 0.0
    %266 = vmatprep.subr.mxu0 0.0
    %267 = vmatpush1.xpose.msra.mxu0 0.0
    %268 = vmatprep.subr.mxu0 0.0
    %269 = vmatpush1.xpose.msra.mxu0 0.0
    %270 = vmatprep.subr.mxu0 0.0
    %271 = vmatpush1.xpose.msra.mxu0 0.0
    %272 = vmatprep.subr.mxu0 0.0
    %273 = vmatpush1.xpose.msra.mxu0 0.0
    %274 = vmatprep.subr.mxu0 0.0
    %275 = vmatpush1.xpose.msra.mxu0 0.0
    %276 = vmatprep.subr.mxu0 0.0
    %277 = vmatpush1.xpose.msra.mxu0 0.0
    %278 = vmatprep.subr.mxu0 0.0
    %279 = vmatpush1.xpose.msra.mxu0 0.0
    %280 = vmatprep.subr.mxu0 0.0
    %281 = vmatpush1.xpose.msra.mxu0 0.0
    %282 = vmatprep.subr.mxu0 0.0
    %283 = vmatpush1.xpose.msra.mxu0 0.0
    %284 = vmatprep.subr.mxu0 0.0
    %285 = vmatpush1.xpose.msra.mxu0 0.0
    %286 = vmatprep.subr.mxu0 0.0
    %287 = vmatpush1.xpose.msra.mxu0 0.0
    %288 = vmatprep.subr.mxu0 0.0
    %289 = vmatpush1.xpose.msra.mxu0 0.0
    %290 = vmatprep.subr.mxu0 0.0
    %291 = vmatpush1.xpose.msra.mxu0 0.0
    %292 = vmatprep.subr.mxu0 0.0
    %293 = vmatpush1.xpose.msra.mxu0 0.0
    %294 = vmatprep.subr.mxu0 0.0
    %295 = vmatpush1.xpose.msra.mxu0 0.0
    %296 = vmatprep.subr.mxu0 0.0
    %297 = vmatpush1.xpose.msra.mxu0 0.0
    %298 = vmatprep.subr.mxu0 0.0
    %299 = vmatpush1.xpose.msra.mxu0 0.0
    %300 = vmatprep.mubr.f32.mxu0 0.0
    %301 = vmatmul.mubr.f32.gmra.mrb[0].mxu0 %v232
    %v302 = vpop.f32.mrb[0].mxu0
    %v303 = vadd.f32 %v150, %v302
    %v304 = vpop.f32.mrb[0].mxu0
    %305 = vdwg.mxu0
    %v306 = vsel %vm154, %v226, -inf
    %307 = vmax.xlane.f32.xlu0 %v306
    %v308 = vpop.xlane.xlu0 %307
    %v309 = vsel %vm154, %v303, -inf
    %310 = vmax.xlane.f32.xlu0 %v309
    %v311 = vpop.xlane.xlu0 %310
    %v312 = vsub.f32 %v226, %v308
    %v313 = vsub.f32 %v303, %v311
    %v314 = vmul.f32 %v312, 1.442695
    %v315 = vpow.pop %v314
    %v316 = vmul.f32 %v313, 1.442695
    %v317 = vpow.pop %v316
    %v318 = vsel %vm154, %v315, 0.0
    %319 = vadd.xlane.f32.xlu0 %v318
    %v320 = vpop.xlane.xlu0 %319
    %v321 = vsel %vm154, %v317, 0.0
    %322 = vadd.xlane.f32.xlu0 %v321
    %v323 = vpop.xlane.xlu0 %322
    %v324 = vrcp.pop %v320
    %v325 = vrcp.pop %v323
    %v326 = vmul.f32 %v315, %v324
    %v327 = vmul.f32 %v317, %v325
    %328 = vrot.lane.b32.xlu0 %v142, 64
    %v329 = vpop.permute.xlu0 %328
    %v332 = vsel %vm154, %v326, 0
    %334 = vmatprep.subr.mxu0 0.0
    %335 = vmatpush1.msra.mxu0 %v329
    %336 = vmatprep.subr.mxu0 0.0
    %337 = vmatpush1.msra.mxu0 0.0
    %338 = vmatprep.subr.mxu0 0.0
    %339 = vmatpush1.msra.mxu0 0.0
    %340 = vmatprep.subr.mxu0 0.0
    %341 = vmatpush1.msra.mxu0 0.0
    %342 = vmatprep.subr.mxu0 0.0
    %343 = vmatpush1.msra.mxu0 0.0
    %344 = vmatprep.subr.mxu0 0.0
    %345 = vmatpush1.msra.mxu0 0.0
    %346 = vmatprep.subr.mxu0 0.0
    %347 = vmatpush1.msra.mxu0 0.0
    %348 = vmatprep.subr.mxu0 0.0
    %349 = vmatpush1.msra.mxu0 0.0
    %350 = vmatprep.subr.mxu0 0.0
    %351 = vmatpush1.msra.mxu0 0.0
    %352 = vmatprep.subr.mxu0 0.0
    %353 = vmatpush1.msra.mxu0 0.0
    %354 = vmatprep.subr.mxu0 0.0
    %355 = vmatpush1.msra.mxu0 0.0
    %356 = vmatprep.subr.mxu0 0.0
    %357 = vmatpush1.msra.mxu0 0.0
    %358 = vmatprep.subr.mxu0 0.0
    %359 = vmatpush1.msra.mxu0 0.0
    %360 = vmatprep.subr.mxu0 0.0
    %361 = vmatpush1.msra.mxu0 0.0
    %362 = vmatprep.subr.mxu0 0.0
    %363 = vmatpush1.msra.mxu0 0.0
    %364 = vmatprep.subr.mxu0 0.0
    %365 = vmatpush1.msra.mxu0 0.0
    %366 = vmatprep.subr.mxu0 0.0
    %367 = vmatpush1.msra.mxu0 0.0
    %368 = vmatprep.subr.mxu0 0.0
    %369 = vmatpush1.msra.mxu0 0.0
    %370 = vmatprep.subr.mxu0 0.0
    %371 = vmatpush1.msra.mxu0 0.0
    %372 = vmatprep.subr.mxu0 0.0
    %373 = vmatpush1.msra.mxu0 0.0
    %374 = vmatprep.subr.mxu0 0.0
    %375 = vmatpush1.msra.mxu0 0.0
    %376 = vmatprep.subr.mxu0 0.0
    %377 = vmatpush1.msra.mxu0 0.0
    %378 = vmatprep.subr.mxu0 0.0
    %379 = vmatpush1.msra.mxu0 0.0
    %380 = vmatprep.subr.mxu0 0.0
    %381 = vmatpush1.msra.mxu0 0.0
    %382 = vmatprep.subr.mxu0 0.0
    %383 = vmatpush1.msra.mxu0 0.0
    %384 = vmatprep.subr.mxu0 0.0
    %385 = vmatpush1.msra.mxu0 0.0
    %386 = vmatprep.subr.mxu0 0.0
    %387 = vmatpush1.msra.mxu0 0.0
    %388 = vmatprep.subr.mxu0 0.0
    %389 = vmatpush1.msra.mxu0 0.0
    %390 = vmatprep.subr.mxu0 0.0
    %391 = vmatpush1.msra.mxu0 0.0
    %392 = vmatprep.subr.mxu0 0.0
    %393 = vmatpush1.msra.mxu0 0.0
    %394 = vmatprep.subr.mxu0 0.0
    %395 = vmatpush1.msra.mxu0 0.0
    %396 = vmatprep.subr.mxu0 0.0
    %397 = vmatpush1.msra.mxu0 0.0
    %398 = vmatprep.mubr.f32.mxu0 0.0
    %399 = vmatmul.mubr.f32.gmra.mrb[0].mxu0 %v332
    %v400 = vpop.f32.mrb[0].mxu0
    %v401 = vadd.f32 0.0, %v400
    %v402 = vpop.f32.mrb[0].mxu0
    %403 = vdwg.mxu0
    %404 = vrot.lane.b32.xlu0 %v147, 64
    %v405 = vpop.permute.xlu0 %404
    %v408 = vsel %vm154, %v327, 0
    %410 = vmatprep.subr.mxu0 0.0
    %411 = vmatpush1.msra.mxu0 %v405
    %412 = vmatprep.subr.mxu0 0.0
    %413 = vmatpush1.msra.mxu0 0.0
    %414 = vmatprep.subr.mxu0 0.0
    %415 = vmatpush1.msra.mxu0 0.0
    %416 = vmatprep.subr.mxu0 0.0
    %417 = vmatpush1.msra.mxu0 0.0
    %418 = vmatprep.subr.mxu0 0.0
    %419 = vmatpush1.msra.mxu0 0.0
    %420 = vmatprep.subr.mxu0 0.0
    %421 = vmatpush1.msra.mxu0 0.0
    %422 = vmatprep.subr.mxu0 0.0
    %423 = vmatpush1.msra.mxu0 0.0
    %424 = vmatprep.subr.mxu0 0.0
    %425 = vmatpush1.msra.mxu0 0.0
    %426 = vmatprep.subr.mxu0 0.0
    %427 = vmatpush1.msra.mxu0 0.0
    %428 = vmatprep.subr.mxu0 0.0
    %429 = vmatpush1.msra.mxu0 0.0
    %430 = vmatprep.subr.mxu0 0.0
    %431 = vmatpush1.msra.mxu0 0.0
    %432 = vmatprep.subr.mxu0 0.0
    %433 = vmatpush1.msra.mxu0 0.0
    %434 = vmatprep.subr.mxu0 0.0
    %435 = vmatpush1.msra.mxu0 0.0
    %436 = vmatprep.subr.mxu0 0.0
    %437 = vmatpush1.msra.mxu0 0.0
    %438 = vmatprep.subr.mxu0 0.0
    %439 = vmatpush1.msra.mxu0 0.0
    %440 = vmatprep.subr.mxu0 0.0
    %441 = vmatpush1.msra.mxu0 0.0
    %442 = vmatprep.subr.mxu0 0.0
    %443 = vmatpush1.msra.mxu0 0.0
    %444 = vmatprep.subr.mxu0 0.0
    %445 = vmatpush1.msra.mxu0 0.0
    %446 = vmatprep.subr.mxu0 0.0
    %447 = vmatpush1.msra.mxu0 0.0
    %448 = vmatprep.subr.mxu0 0.0
    %449 = vmatpush1.msra.mxu0 0.0
    %450 = vmatprep.subr.mxu0 0.0
    %451 = vmatpush1.msra.mxu0 0.0
    %452 = vmatprep.subr.mxu0 0.0
    %453 = vmatpush1.msra.mxu0 0.0
    %454 = vmatprep.subr.mxu0 0.0
    %455 = vmatpush1.msra.mxu0 0.0
    %456 = vmatprep.subr.mxu0 0.0
    %457 = vmatpush1.msra.mxu0 0.0
    %458 = vmatprep.subr.mxu0 0.0
    %459 = vmatpush1.msra.mxu0 0.0
    %460 = vmatprep.subr.mxu0 0.0
    %461 = vmatpush1.msra.mxu0 0.0
    %462 = vmatprep.subr.mxu0 0.0
    %463 = vmatpush1.msra.mxu0 0.0
    %464 = vmatprep.subr.mxu0 0.0
    %465 = vmatpush1.msra.mxu0 0.0
    %466 = vmatprep.subr.mxu0 0.0
    %467 = vmatpush1.msra.mxu0 0.0
    %468 = vmatprep.subr.mxu0 0.0
    %469 = vmatpush1.msra.mxu0 0.0
    %470 = vmatprep.subr.mxu0 0.0
    %471 = vmatpush1.msra.mxu0 0.0
    %472 = vmatprep.subr.mxu0 0.0
    %473 = vmatpush1.msra.mxu0 0.0
    %474 = vmatprep.mubr.f32.mxu0 0.0
    %475 = vmatmul.mubr.f32.gmra.mrb[0].mxu0 %v408
    %v476 = vpop.f32.mrb[0].mxu0
    %v477 = vadd.f32 0.0, %v476
    %v478 = vpop.f32.mrb[0].mxu0
    %479 = vdwg.mxu0
    %480 = vst.msk [vmem:[#allocation2] sm:$0xff] %vm154, %v401
    %481 = vst.msk [vmem:[#allocation2 + $0x8] sm:$0xff] %vm154, %v477
    %482 = vrot.lane.b32.xlu0 %v142, 120
    %v483 = vpop.permute.xlu0 %482
    %484 = vrot.lane.b32.xlu0 %v142, 88
    %v485 = vpop.permute.xlu0 %484
    %v486 = vsel %vm154, %v483, 0
    %v488 = vsel %vm154, %v485, 0
    %490 = vmatprep.subr.mxu0 0.0
    %491 = vmatpush1.xpose.msra.mxu0 %v488
    %492 = vmatprep.subr.mxu0 0.0
    %493 = vmatpush1.xpose.msra.mxu0 0.0
    %494 = vmatprep.subr.mxu0 0.0
    %495 = vmatpush1.xpose.msra.mxu0 0.0
    %496 = vmatprep.subr.mxu0 0.0
    %497 = vmatpush1.xpose.msra.mxu0 0.0
    %498 = vmatprep.subr.mxu0 0.0
    %499 = vmatpush1.xpose.msra.mxu0 0.0
    %500 = vmatprep.subr.mxu0 0.0
    %501 = vmatpush1.xpose.msra.mxu0 0.0
    %502 = vmatprep.subr.mxu0 0.0
    %503 = vmatpush1.xpose.msra.mxu0 0.0
    %504 = vmatprep.subr.mxu0 0.0
    %505 = vmatpush1.xpose.msra.mxu0 0.0
    %506 = vmatprep.subr.mxu0 0.0
    %507 = vmatpush1.xpose.msra.mxu0 0.0
    %508 = vmatprep.subr.mxu0 0.0
    %509 = vmatpush1.xpose.msra.mxu0 0.0
    %510 = vmatprep.subr.mxu0 0.0
    %511 = vmatpush1.xpose.msra.mxu0 0.0
    %512 = vmatprep.subr.mxu0 0.0
    %513 = vmatpush1.xpose.msra.mxu0 0.0
    %514 = vmatprep.subr.mxu0 0.0
    %515 = vmatpush1.xpose.msra.mxu0 0.0
    %516 = vmatprep.subr.mxu0 0.0
    %517 = vmatpush1.xpose.msra.mxu0 0.0
    %518 = vmatprep.subr.mxu0 0.0
    %519 = vmatpush1.xpose.msra.mxu0 0.0
    %520 = vmatprep.subr.mxu0 0.0
    %521 = vmatpush1.xpose.msra.mxu0 0.0
    %522 = vmatprep.subr.mxu0 0.0
    %523 = vmatpush1.xpose.msra.mxu0 0.0
    %524 = vmatprep.subr.mxu0 0.0
    %525 = vmatpush1.xpose.msra.mxu0 0.0
    %526 = vmatprep.subr.mxu0 0.0
    %527 = vmatpush1.xpose.msra.mxu0 0.0
    %528 = vmatprep.subr.mxu0 0.0
    %529 = vmatpush1.xpose.msra.mxu0 0.0
    %530 = vmatprep.subr.mxu0 0.0
    %531 = vmatpush1.xpose.msra.mxu0 0.0
    %532 = vmatprep.subr.mxu0 0.0
    %533 = vmatpush1.xpose.msra.mxu0 0.0
    %534 = vmatprep.subr.mxu0 0.0
    %535 = vmatpush1.xpose.msra.mxu0 0.0
    %536 = vmatprep.subr.mxu0 0.0
    %537 = vmatpush1.xpose.msra.mxu0 0.0
    %538 = vmatprep.subr.mxu0 0.0
    %539 = vmatpush1.xpose.msra.mxu0 0.0
    %540 = vmatprep.subr.mxu0 0.0
    %541 = vmatpush1.xpose.msra.mxu0 0.0
    %542 = vmatprep.subr.mxu0 0.0
    %543 = vmatpush1.xpose.msra.mxu0 0.0
    %544 = vmatprep.subr.mxu0 0.0
    %545 = vmatpush1.xpose.msra.mxu0 0.0
    %546 = vmatprep.subr.mxu0 0.0
    %547 = vmatpush1.xpose.msra.mxu0 0.0
    %548 = vmatprep.subr.mxu0 0.0
    %549 = vmatpush1.xpose.msra.mxu0 0.0
    %550 = vmatprep.subr.mxu0 0.0
    %551 = vmatpush1.xpose.msra.mxu0 0.0
    %552 = vmatprep.subr.mxu0 0.0
    %553 = vmatpush1.xpose.msra.mxu0 0.0
    %554 = vmatprep.mubr.f32.mxu0 0.0
    %555 = vmatmul.mubr.f32.gmra.mrb[0].mxu0 %v486
    %v556 = vpop.f32.mrb[0].mxu0
    %v557 = vadd.f32 %v150, %v556
    %v558 = vpop.f32.mrb[0].mxu0
    %559 = vdwg.mxu0
    %560 = vrot.lane.b32.xlu0 %v147, 120
    %v561 = vpop.permute.xlu0 %560
    %562 = vrot.lane.b32.xlu0 %v147, 88
    %v563 = vpop.permute.xlu0 %562
    %v564 = vsel %vm154, %v561, 0
    %v566 = vsel %vm154, %v563, 0
    %568 = vmatprep.subr.mxu0 0.0
    %569 = vmatpush1.xpose.msra.mxu0 %v566
    %570 = vmatprep.subr.mxu0 0.0
    %571 = vmatpush1.xpose.msra.mxu0 0.0
    %572 = vmatprep.subr.mxu0 0.0
    %573 = vmatpush1.xpose.msra.mxu0 0.0
    %574 = vmatprep.subr.mxu0 0.0
    %575 = vmatpush1.xpose.msra.mxu0 0.0
    %576 = vmatprep.subr.mxu0 0.0
    %577 = vmatpush1.xpose.msra.mxu0 0.0
    %578 = vmatprep.subr.mxu0 0.0
    %579 = vmatpush1.xpose.msra.mxu0 0.0
    %580 = vmatprep.subr.mxu0 0.0
    %581 = vmatpush1.xpose.msra.mxu0 0.0
    %582 = vmatprep.subr.mxu0 0.0
    %583 = vmatpush1.xpose.msra.mxu0 0.0
    %584 = vmatprep.subr.mxu0 0.0
    %585 = vmatpush1.xpose.msra.mxu0 0.0
    %586 = vmatprep.subr.mxu0 0.0
    %587 = vmatpush1.xpose.msra.mxu0 0.0
    %588 = vmatprep.subr.mxu0 0.0
    %589 = vmatpush1.xpose.msra.mxu0 0.0
    %590 = vmatprep.subr.mxu0 0.0
    %591 = vmatpush1.xpose.msra.mxu0 0.0
    %592 = vmatprep.subr.mxu0 0.0
    %593 = vmatpush1.xpose.msra.mxu0 0.0
    %594 = vmatprep.subr.mxu0 0.0
    %595 = vmatpush1.xpose.msra.mxu0 0.0
    %596 = vmatprep.subr.mxu0 0.0
    %597 = vmatpush1.xpose.msra.mxu0 0.0
    %598 = vmatprep.subr.mxu0 0.0
    %599 = vmatpush1.xpose.msra.mxu0 0.0
    %600 = vmatprep.subr.mxu0 0.0
    %601 = vmatpush1.xpose.msra.mxu0 0.0
    %602 = vmatprep.subr.mxu0 0.0
    %603 = vmatpush1.xpose.msra.mxu0 0.0
    %604 = vmatprep.subr.mxu0 0.0
    %605 = vmatpush1.xpose.msra.mxu0 0.0
    %606 = vmatprep.subr.mxu0 0.0
    %607 = vmatpush1.xpose.msra.mxu0 0.0
    %608 = vmatprep.subr.mxu0 0.0
    %609 = vmatpush1.xpose.msra.mxu0 0.0
    %610 = vmatprep.subr.mxu0 0.0
    %611 = vmatpush1.xpose.msra.mxu0 0.0
    %612 = vmatprep.subr.mxu0 0.0
    %613 = vmatpush1.xpose.msra.mxu0 0.0
    %614 = vmatprep.subr.mxu0 0.0
    %615 = vmatpush1.xpose.msra.mxu0 0.0
    %616 = vmatprep.subr.mxu0 0.0
    %617 = vmatpush1.xpose.msra.mxu0 0.0
    %618 = vmatprep.subr.mxu0 0.0
    %619 = vmatpush1.xpose.msra.mxu0 0.0
    %620 = vmatprep.subr.mxu0 0.0
    %621 = vmatpush1.xpose.msra.mxu0 0.0
    %622 = vmatprep.subr.mxu0 0.0
    %623 = vmatpush1.xpose.msra.mxu0 0.0
    %624 = vmatprep.subr.mxu0 0.0
    %625 = vmatpush1.xpose.msra.mxu0 0.0
    %626 = vmatprep.subr.mxu0 0.0
    %627 = vmatpush1.xpose.msra.mxu0 0.0
    %628 = vmatprep.subr.mxu0 0.0
    %629 = vmatpush1.xpose.msra.mxu0 0.0
    %630 = vmatprep.subr.mxu0 0.0
    %631 = vmatpush1.xpose.msra.mxu0 0.0
    %632 = vmatprep.mubr.f32.mxu0 0.0
    %633 = vmatmul.mubr.f32.gmra.mrb[0].mxu0 %v564
    %v634 = vpop.f32.mrb[0].mxu0
    %v635 = vadd.f32 %v150, %v634
    %v636 = vpop.f32.mrb[0].mxu0
    %637 = vdwg.mxu0
    %v638 = vsel %vm154, %v557, -inf
    %639 = vmax.xlane.f32.xlu0 %v638
    %v640 = vpop.xlane.xlu0 %639
    %v641 = vsel %vm154, %v635, -inf
    %642 = vmax.xlane.f32.xlu0 %v641
    %v643 = vpop.xlane.xlu0 %642
    %v644 = vsub.f32 %v557, %v640
    %v645 = vsub.f32 %v635, %v643
    %v646 = vmul.f32 %v644, 1.442695
    %v647 = vpow.pop %v646
    %v648 = vmul.f32 %v645, 1.442695
    %v649 = vpow.pop %v648
    %v650 = vsel %vm154, %v647, 0.0
    %651 = vadd.xlane.f32.xlu0 %v650
    %v652 = vpop.xlane.xlu0 %651
    %v653 = vsel %vm154, %v649, 0.0
    %654 = vadd.xlane.f32.xlu0 %v653
    %v655 = vpop.xlane.xlu0 %654
    %v656 = vrcp.pop %v652
    %v657 = vrcp.pop %v655
    %v658 = vmul.f32 %v647, %v656
    %v659 = vmul.f32 %v649, %v657
    %660 = vrot.lane.b32.xlu0 %v142, 56
    %v661 = vpop.permute.xlu0 %660
    %v664 = vsel %vm154, %v658, 0
    %666 = vmatprep.subr.mxu0 0.0
    %667 = vmatpush1.msra.mxu0 %v661
    %668 = vmatprep.subr.mxu0 0.0
    %669 = vmatpush1.msra.mxu0 0.0
    %670 = vmatprep.subr.mxu0 0.0
    %671 = vmatpush1.msra.mxu0 0.0
    %672 = vmatprep.subr.mxu0 0.0
    %673 = vmatpush1.msra.mxu0 0.0
    %674 = vmatprep.subr.mxu0 0.0
    %675 = vmatpush1.msra.mxu0 0.0
    %676 = vmatprep.subr.mxu0 0.0
    %677 = vmatpush1.msra.mxu0 0.0
    %678 = vmatprep.subr.mxu0 0.0
    %679 = vmatpush1.msra.mxu0 0.0
    %680 = vmatprep.subr.mxu0 0.0
    %681 = vmatpush1.msra.mxu0 0.0
    %682 = vmatprep.subr.mxu0 0.0
    %683 = vmatpush1.msra.mxu0 0.0
    %684 = vmatprep.subr.mxu0 0.0
    %685 = vmatpush1.msra.mxu0 0.0
    %686 = vmatprep.subr.mxu0 0.0
    %687 = vmatpush1.msra.mxu0 0.0
    %688 = vmatprep.subr.mxu0 0.0
    %689 = vmatpush1.msra.mxu0 0.0
    %690 = vmatprep.subr.mxu0 0.0
    %691 = vmatpush1.msra.mxu0 0.0
    %692 = vmatprep.subr.mxu0 0.0
    %693 = vmatpush1.msra.mxu0 0.0
    %694 = vmatprep.subr.mxu0 0.0
    %695 = vmatpush1.msra.mxu0 0.0
    %696 = vmatprep.subr.mxu0 0.0
    %697 = vmatpush1.msra.mxu0 0.0
    %698 = vmatprep.subr.mxu0 0.0
    %699 = vmatpush1.msra.mxu0 0.0
    %700 = vmatprep.subr.mxu0 0.0
    %701 = vmatpush1.msra.mxu0 0.0
    %702 = vmatprep.subr.mxu0 0.0
    %703 = vmatpush1.msra.mxu0 0.0
    %704 = vmatprep.subr.mxu0 0.0
    %705 = vmatpush1.msra.mxu0 0.0
    %706 = vmatprep.subr.mxu0 0.0
    %707 = vmatpush1.msra.mxu0 0.0
    %708 = vmatprep.subr.mxu0 0.0
    %709 = vmatpush1.msra.mxu0 0.0
    %710 = vmatprep.subr.mxu0 0.0
    %711 = vmatpush1.msra.mxu0 0.0
    %712 = vmatprep.subr.mxu0 0.0
    %713 = vmatpush1.msra.mxu0 0.0
    %714 = vmatprep.subr.mxu0 0.0
    %715 = vmatpush1.msra.mxu0 0.0
    %716 = vmatprep.subr.mxu0 0.0
    %717 = vmatpush1.msra.mxu0 0.0
    %718 = vmatprep.subr.mxu0 0.0
    %719 = vmatpush1.msra.mxu0 0.0
    %720 = vmatprep.subr.mxu0 0.0
    %721 = vmatpush1.msra.mxu0 0.0
    %722 = vmatprep.subr.mxu0 0.0
    %723 = vmatpush1.msra.mxu0 0.0
    %724 = vmatprep.subr.mxu0 0.0
    %725 = vmatpush1.msra.mxu0 0.0
    %726 = vmatprep.subr.mxu0 0.0
    %727 = vmatpush1.msra.mxu0 0.0
    %728 = vmatprep.subr.mxu0 0.0
    %729 = vmatpush1.msra.mxu0 0.0
    %730 = vmatprep.mubr.f32.mxu0 0.0
    %731 = vmatmul.mubr.f32.gmra.mrb[0].mxu0 %v664
    %v732 = vpop.f32.mrb[0].mxu0
    %v733 = vadd.f32 0.0, %v732
    %v734 = vpop.f32.mrb[0].mxu0
    %735 = vdwg.mxu0
    %736 = vrot.lane.b32.xlu0 %v147, 56
    %v737 = vpop.permute.xlu0 %736
    %v740 = vsel %vm154, %v659, 0
    %742 = vmatprep.subr.mxu0 0.0
    %743 = vmatpush1.msra.mxu0 %v737
    %744 = vmatprep.subr.mxu0 0.0
    %745 = vmatpush1.msra.mxu0 0.0
    %746 = vmatprep.subr.mxu0 0.0
    %747 = vmatpush1.msra.mxu0 0.0
    %748 = vmatprep.subr.mxu0 0.0
    %749 = vmatpush1.msra.mxu0 0.0
    %750 = vmatprep.subr.mxu0 0.0
    %751 = vmatpush1.msra.mxu0 0.0
    %752 = vmatprep.subr.mxu0 0.0
    %753 = vmatpush1.msra.mxu0 0.0
    %754 = vmatprep.subr.mxu0 0.0
    %755 = vmatpush1.msra.mxu0 0.0
    %756 = vmatprep.subr.mxu0 0.0
    %757 = vmatpush1.msra.mxu0 0.0
    %758 = vmatprep.subr.mxu0 0.0
    %759 = vmatpush1.msra.mxu0 0.0
    %760 = vmatprep.subr.mxu0 0.0
    %761 = vmatpush1.msra.mxu0 0.0
    %762 = vmatprep.subr.mxu0 0.0
    %763 = vmatpush1.msra.mxu0 0.0
    %764 = vmatprep.subr.mxu0 0.0
    %765 = vmatpush1.msra.mxu0 0.0
    %766 = vmatprep.subr.mxu0 0.0
    %767 = vmatpush1.msra.mxu0 0.0
    %768 = vmatprep.subr.mxu0 0.0
    %769 = vmatpush1.msra.mxu0 0.0
    %770 = vmatprep.subr.mxu0 0.0
    %771 = vmatpush1.msra.mxu0 0.0
    %772 = vmatprep.subr.mxu0 0.0
    %773 = vmatpush1.msra.mxu0 0.0
    %774 = vmatprep.subr.mxu0 0.0
    %775 = vmatpush1.msra.mxu0 0.0
    %776 = vmatprep.subr.mxu0 0.0
    %777 = vmatpush1.msra.mxu0 0.0
    %778 = vmatprep.subr.mxu0 0.0
    %779 = vmatpush1.msra.mxu0 0.0
    %780 = vmatprep.subr.mxu0 0.0
    %781 = vmatpush1.msra.mxu0 0.0
    %782 = vmatprep.subr.mxu0 0.0
    %783 = vmatpush1.msra.mxu0 0.0
    %784 = vmatprep.subr.mxu0 0.0
    %785 = vmatpush1.msra.mxu0 0.0
    %786 = vmatprep.subr.mxu0 0.0
    %787 = vmatpush1.msra.mxu0 0.0
    %788 = vmatprep.subr.mxu0 0.0
    %789 = vmatpush1.msra.mxu0 0.0
    %790 = vmatprep.subr.mxu0 0.0
    %791 = vmatpush1.msra.mxu0 0.0
    %792 = vmatprep.subr.mxu0 0.0
    %793 = vmatpush1.msra.mxu0 0.0
    %794 = vmatprep.subr.mxu0 0.0
    %795 = vmatpush1.msra.mxu0 0.0
    %796 = vmatprep.subr.mxu0 0.0
    %797 = vmatpush1.msra.mxu0 0.0
    %798 = vmatprep.subr.mxu0 0.0
    %799 = vmatpush1.msra.mxu0 0.0
    %800 = vmatprep.subr.mxu0 0.0
    %801 = vmatpush1.msra.mxu0 0.0
    %802 = vmatprep.subr.mxu0 0.0
    %803 = vmatpush1.msra.mxu0 0.0
    %804 = vmatprep.subr.mxu0 0.0
    %805 = vmatpush1.msra.mxu0 0.0
    %806 = vmatprep.mubr.f32.mxu0 0.0
    %807 = vmatmul.mubr.f32.gmra.mrb[0].mxu0 %v740
    %v808 = vpop.f32.mrb[0].mxu0
    %v809 = vadd.f32 0.0, %v808
    %v810 = vpop.f32.mrb[0].mxu0
    %811 = vdwg.mxu0
    %814 = vrot.lane.b32.xlu0 %v733, 8
    %v815 = vpop.permute.xlu0 %814
    %816 = vrot.lane.b32.xlu0 %v809, 8
    %v817 = vpop.permute.xlu0 %816
    %vm820 = vcmask 130112
    %821 = vst.msk [vmem:[#allocation2] sm:$0xff] %vm820, %v815
    %822 = vst.msk [vmem:[#allocation2 + $0x8] sm:$0xff] %vm820, %v817
    %823 = vrot.lane.b32.xlu0 %v142, 112
    %v824 = vpop.permute.xlu0 %823
    %825 = vrot.lane.b32.xlu0 %v142, 80
    %v826 = vpop.permute.xlu0 %825
    %v827 = vsel %vm154, %v824, 0
    %v829 = vsel %vm154, %v826, 0
    %831 = vmatprep.subr.mxu0 0.0
    %832 = vmatpush1.xpose.msra.mxu0 %v829
    %833 = vmatprep.subr.mxu0 0.0
    %834 = vmatpush1.xpose.msra.mxu0 0.0
    %835 = vmatprep.subr.mxu0 0.0
    %836 = vmatpush1.xpose.msra.mxu0 0.0
    %837 = vmatprep.subr.mxu0 0.0
    %838 = vmatpush1.xpose.msra.mxu0 0.0
    %839 = vmatprep.subr.mxu0 0.0
    %840 = vmatpush1.xpose.msra.mxu0 0.0
    %841 = vmatprep.subr.mxu0 0.0
    %842 = vmatpush1.xpose.msra.mxu0 0.0
    %843 = vmatprep.subr.mxu0 0.0
    %844 = vmatpush1.xpose.msra.mxu0 0.0
    %845 = vmatprep.subr.mxu0 0.0
    %846 = vmatpush1.xpose.msra.mxu0 0.0
    %847 = vmatprep.subr.mxu0 0.0
    %848 = vmatpush1.xpose.msra.mxu0 0.0
    %849 = vmatprep.subr.mxu0 0.0
    %850 = vmatpush1.xpose.msra.mxu0 0.0
    %851 = vmatprep.subr.mxu0 0.0
    %852 = vmatpush1.xpose.msra.mxu0 0.0
    %853 = vmatprep.subr.mxu0 0.0
    %854 = vmatpush1.xpose.msra.mxu0 0.0
    %855 = vmatprep.subr.mxu0 0.0
    %856 = vmatpush1.xpose.msra.mxu0 0.0
    %857 = vmatprep.subr.mxu0 0.0
    %858 = vmatpush1.xpose.msra.mxu0 0.0
    %859 = vmatprep.subr.mxu0 0.0
    %860 = vmatpush1.xpose.msra.mxu0 0.0
    %861 = vmatprep.subr.mxu0 0.0
    %862 = vmatpush1.xpose.msra.mxu0 0.0
    %863 = vmatprep.subr.mxu0 0.0
    %864 = vmatpush1.xpose.msra.mxu0 0.0
    %865 = vmatprep.subr.mxu0 0.0
    %866 = vmatpush1.xpose.msra.mxu0 0.0
    %867 = vmatprep.subr.mxu0 0.0
    %868 = vmatpush1.xpose.msra.mxu0 0.0
    %869 = vmatprep.subr.mxu0 0.0
    %870 = vmatpush1.xpose.msra.mxu0 0.0
    %871 = vmatprep.subr.mxu0 0.0
    %872 = vmatpush1.xpose.msra.mxu0 0.0
    %873 = vmatprep.subr.mxu0 0.0
    %874 = vmatpush1.xpose.msra.mxu0 0.0
    %875 = vmatprep.subr.mxu0 0.0
    %876 = vmatpush1.xpose.msra.mxu0 0.0
    %877 = vmatprep.subr.mxu0 0.0
    %878 = vmatpush1.xpose.msra.mxu0 0.0
    %879 = vmatprep.subr.mxu0 0.0
    %880 = vmatpush1.xpose.msra.mxu0 0.0
    %881 = vmatprep.subr.mxu0 0.0
    %882 = vmatpush1.xpose.msra.mxu0 0.0
    %883 = vmatprep.subr.mxu0 0.0
    %884 = vmatpush1.xpose.msra.mxu0 0.0
    %885 = vmatprep.subr.mxu0 0.0
    %886 = vmatpush1.xpose.msra.mxu0 0.0
    %887 = vmatprep.subr.mxu0 0.0
    %888 = vmatpush1.xpose.msra.mxu0 0.0
    %889 = vmatprep.subr.mxu0 0.0
    %890 = vmatpush1.xpose.msra.mxu0 0.0
    %891 = vmatprep.subr.mxu0 0.0
    %892 = vmatpush1.xpose.msra.mxu0 0.0
    %893 = vmatprep.subr.mxu0 0.0
    %894 = vmatpush1.xpose.msra.mxu0 0.0
    %895 = vmatprep.mubr.f32.mxu0 0.0
    %896 = vmatmul.mubr.f32.gmra.mrb[0].mxu0 %v827
    %v897 = vpop.f32.mrb[0].mxu0
    %v898 = vadd.f32 %v150, %v897
    %v899 = vpop.f32.mrb[0].mxu0
    %900 = vdwg.mxu0
    %901 = vrot.lane.b32.xlu0 %v147, 112
    %v902 = vpop.permute.xlu0 %901
    %903 = vrot.lane.b32.xlu0 %v147, 80
    %v904 = vpop.permute.xlu0 %903
    %v905 = vsel %vm154, %v902, 0
    %v907 = vsel %vm154, %v904, 0
    %909 = vmatprep.subr.mxu0 0.0
    %910 = vmatpush1.xpose.msra.mxu0 %v907
    %911 = vmatprep.subr.mxu0 0.0
    %912 = vmatpush1.xpose.msra.mxu0 0.0
    %913 = vmatprep.subr.mxu0 0.0
    %914 = vmatpush1.xpose.msra.mxu0 0.0
    %915 = vmatprep.subr.mxu0 0.0
    %916 = vmatpush1.xpose.msra.mxu0 0.0
    %917 = vmatprep.subr.mxu0 0.0
    %918 = vmatpush1.xpose.msra.mxu0 0.0
    %919 = vmatprep.subr.mxu0 0.0
    %920 = vmatpush1.xpose.msra.mxu0 0.0
    %921 = vmatprep.subr.mxu0 0.0
    %922 = vmatpush1.xpose.msra.mxu0 0.0
    %923 = vmatprep.subr.mxu0 0.0
    %924 = vmatpush1.xpose.msra.mxu0 0.0
    %925 = vmatprep.subr.mxu0 0.0
    %926 = vmatpush1.xpose.msra.mxu0 0.0
    %927 = vmatprep.subr.mxu0 0.0
    %928 = vmatpush1.xpose.msra.mxu0 0.0
    %929 = vmatprep.subr.mxu0 0.0
    %930 = vmatpush1.xpose.msra.mxu0 0.0
    %931 = vmatprep.subr.mxu0 0.0
    %932 = vmatpush1.xpose.msra.mxu0 0.0
    %933 = vmatprep.subr.mxu0 0.0
    %934 = vmatpush1.xpose.msra.mxu0 0.0
    %935 = vmatprep.subr.mxu0 0.0
    %936 = vmatpush1.xpose.msra.mxu0 0.0
    %937 = vmatprep.subr.mxu0 0.0
    %938 = vmatpush1.xpose.msra.mxu0 0.0
    %939 = vmatprep.subr.mxu0 0.0
    %940 = vmatpush1.xpose.msra.mxu0 0.0
    %941 = vmatprep.subr.mxu0 0.0
    %942 = vmatpush1.xpose.msra.mxu0 0.0
    %943 = vmatprep.subr.mxu0 0.0
    %944 = vmatpush1.xpose.msra.mxu0 0.0
    %945 = vmatprep.subr.mxu0 0.0
    %946 = vmatpush1.xpose.msra.mxu0 0.0
    %947 = vmatprep.subr.mxu0 0.0
    %948 = vmatpush1.xpose.msra.mxu0 0.0
    %949 = vmatprep.subr.mxu0 0.0
    %950 = vmatpush1.xpose.msra.mxu0 0.0
    %951 = vmatprep.subr.mxu0 0.0
    %952 = vmatpush1.xpose.msra.mxu0 0.0
    %953 = vmatprep.subr.mxu0 0.0
    %954 = vmatpush1.xpose.msra.mxu0 0.0
    %955 = vmatprep.subr.mxu0 0.0
    %956 = vmatpush1.xpose.msra.mxu0 0.0
    %957 = vmatprep.subr.mxu0 0.0
    %958 = vmatpush1.xpose.msra.mxu0 0.0
    %959 = vmatprep.subr.mxu0 0.0
    %960 = vmatpush1.xpose.msra.mxu0 0.0
    %961 = vmatprep.subr.mxu0 0.0
    %962 = vmatpush1.xpose.msra.mxu0 0.0
    %963 = vmatprep.subr.mxu0 0.0
    %964 = vmatpush1.xpose.msra.mxu0 0.0
    %965 = vmatprep.subr.mxu0 0.0
    %966 = vmatpush1.xpose.msra.mxu0 0.0
    %967 = vmatprep.subr.mxu0 0.0
    %968 = vmatpush1.xpose.msra.mxu0 0.0
    %969 = vmatprep.subr.mxu0 0.0
    %970 = vmatpush1.xpose.msra.mxu0 0.0
    %971 = vmatprep.subr.mxu0 0.0
    %972 = vmatpush1.xpose.msra.mxu0 0.0
    %973 = vmatprep.mubr.f32.mxu0 0.0
    %974 = vmatmul.mubr.f32.gmra.mrb[0].mxu0 %v905
    %v975 = vpop.f32.mrb[0].mxu0
    %v976 = vadd.f32 %v150, %v975
    %v977 = vpop.f32.mrb[0].mxu0
    %978 = vdwg.mxu0
    %v979 = vsel %vm154, %v898, -inf
    %980 = vmax.xlane.f32.xlu0 %v979
    %v981 = vpop.xlane.xlu0 %980
    %v982 = vsel %vm154, %v976, -inf
    %983 = vmax.xlane.f32.xlu0 %v982
    %v984 = vpop.xlane.xlu0 %983
    %v985 = vsub.f32 %v898, %v981
    %v986 = vsub.f32 %v976, %v984
    %v987 = vmul.f32 %v985, 1.442695
    %v988 = vpow.pop %v987
    %v989 = vmul.f32 %v986, 1.442695
    %v990 = vpow.pop %v989
    %v991 = vsel %vm154, %v988, 0.0
    %992 = vadd.xlane.f32.xlu0 %v991
    %v993 = vpop.xlane.xlu0 %992
    %v994 = vsel %vm154, %v990, 0.0
    %995 = vadd.xlane.f32.xlu0 %v994
    %v996 = vpop.xlane.xlu0 %995
    %v997 = vrcp.pop %v993
    %v998 = vrcp.pop %v996
    %v999 = vmul.f32 %v988, %v997
    %v1000 = vmul.f32 %v990, %v998
    %1001 = vrot.lane.b32.xlu0 %v142, 48
    %v1002 = vpop.permute.xlu0 %1001
    %v1005 = vsel %vm154, %v999, 0
    %1007 = vmatprep.subr.mxu0 0.0
    %1008 = vmatpush1.msra.mxu0 %v1002
    %1009 = vmatprep.subr.mxu0 0.0
    %1010 = vmatpush1.msra.mxu0 0.0
    %1011 = vmatprep.subr.mxu0 0.0
    %1012 = vmatpush1.msra.mxu0 0.0
    %1013 = vmatprep.subr.mxu0 0.0
    %1014 = vmatpush1.msra.mxu0 0.0
    %1015 = vmatprep.subr.mxu0 0.0
    %1016 = vmatpush1.msra.mxu0 0.0
    %1017 = vmatprep.subr.mxu0 0.0
    %1018 = vmatpush1.msra.mxu0 0.0
    %1019 = vmatprep.subr.mxu0 0.0
    %1020 = vmatpush1.msra.mxu0 0.0
    %1021 = vmatprep.subr.mxu0 0.0
    %1022 = vmatpush1.msra.mxu0 0.0
    %1023 = vmatprep.subr.mxu0 0.0
    %1024 = vmatpush1.msra.mxu0 0.0
    %1025 = vmatprep.subr.mxu0 0.0
    %1026 = vmatpush1.msra.mxu0 0.0
    %1027 = vmatprep.subr.mxu0 0.0
    %1028 = vmatpush1.msra.mxu0 0.0
    %1029 = vmatprep.subr.mxu0 0.0
    %1030 = vmatpush1.msra.mxu0 0.0
    %1031 = vmatprep.subr.mxu0 0.0
    %1032 = vmatpush1.msra.mxu0 0.0
    %1033 = vmatprep.subr.mxu0 0.0
    %1034 = vmatpush1.msra.mxu0 0.0
    %1035 = vmatprep.subr.mxu0 0.0
    %1036 = vmatpush1.msra.mxu0 0.0
    %1037 = vmatprep.subr.mxu0 0.0
    %1038 = vmatpush1.msra.mxu0 0.0
    %1039 = vmatprep.subr.mxu0 0.0
    %1040 = vmatpush1.msra.mxu0 0.0
    %1041 = vmatprep.subr.mxu0 0.0
    %1042 = vmatpush1.msra.mxu0 0.0
    %1043 = vmatprep.subr.mxu0 0.0
    %1044 = vmatpush1.msra.mxu0 0.0
    %1045 = vmatprep.subr.mxu0 0.0
    %1046 = vmatpush1.msra.mxu0 0.0
    %1047 = vmatprep.subr.mxu0 0.0
    %1048 = vmatpush1.msra.mxu0 0.0
    %1049 = vmatprep.subr.mxu0 0.0
    %1050 = vmatpush1.msra.mxu0 0.0
    %1051 = vmatprep.subr.mxu0 0.0
    %1052 = vmatpush1.msra.mxu0 0.0
    %1053 = vmatprep.subr.mxu0 0.0
    %1054 = vmatpush1.msra.mxu0 0.0
    %1055 = vmatprep.subr.mxu0 0.0
    %1056 = vmatpush1.msra.mxu0 0.0
    %1057 = vmatprep.subr.mxu0 0.0
    %1058 = vmatpush1.msra.mxu0 0.0
    %1059 = vmatprep.subr.mxu0 0.0
    %1060 = vmatpush1.msra.mxu0 0.0
    %1061 = vmatprep.subr.mxu0 0.0
    %1062 = vmatpush1.msra.mxu0 0.0
    %1063 = vmatprep.subr.mxu0 0.0
    %1064 = vmatpush1.msra.mxu0 0.0
    %1065 = vmatprep.subr.mxu0 0.0
    %1066 = vmatpush1.msra.mxu0 0.0
    %1067 = vmatprep.subr.mxu0 0.0
    %1068 = vmatpush1.msra.mxu0 0.0
    %1069 = vmatprep.subr.mxu0 0.0
    %1070 = vmatpush1.msra.mxu0 0.0
    %1071 = vmatprep.mubr.f32.mxu0 0.0
    %1072 = vmatmul.mubr.f32.gmra.mrb[0].mxu0 %v1005
    %v1073 = vpop.f32.mrb[0].mxu0
    %v1074 = vadd.f32 0.0, %v1073
    %v1075 = vpop.f32.mrb[0].mxu0
    %1076 = vdwg.mxu0
    %1077 = vrot.lane.b32.xlu0 %v147, 48
    %v1078 = vpop.permute.xlu0 %1077
    %v1081 = vsel %vm154, %v1000, 0
    %1083 = vmatprep.subr.mxu0 0.0
    %1084 = vmatpush1.msra.mxu0 %v1078
    %1085 = vmatprep.subr.mxu0 0.0
    %1086 = vmatpush1.msra.mxu0 0.0
    %1087 = vmatprep.subr.mxu0 0.0
    %1088 = vmatpush1.msra.mxu0 0.0
    %1089 = vmatprep.subr.mxu0 0.0
    %1090 = vmatpush1.msra.mxu0 0.0
    %1091 = vmatprep.subr.mxu0 0.0
    %1092 = vmatpush1.msra.mxu0 0.0
    %1093 = vmatprep.subr.mxu0 0.0
    %1094 = vmatpush1.msra.mxu0 0.0
    %1095 = vmatprep.subr.mxu0 0.0
    %1096 = vmatpush1.msra.mxu0 0.0
    %1097 = vmatprep.subr.mxu0 0.0
    %1098 = vmatpush1.msra.mxu0 0.0
    %1099 = vmatprep.subr.mxu0 0.0
    %1100 = vmatpush1.msra.mxu0 0.0
    %1101 = vmatprep.subr.mxu0 0.0
    %1102 = vmatpush1.msra.mxu0 0.0
    %1103 = vmatprep.subr.mxu0 0.0
    %1104 = vmatpush1.msra.mxu0 0.0
    %1105 = vmatprep.subr.mxu0 0.0
    %1106 = vmatpush1.msra.mxu0 0.0
    %1107 = vmatprep.subr.mxu0 0.0
    %1108 = vmatpush1.msra.mxu0 0.0
    %1109 = vmatprep.subr.mxu0 0.0
    %1110 = vmatpush1.msra.mxu0 0.0
    %1111 = vmatprep.subr.mxu0 0.0
    %1112 = vmatpush1.msra.mxu0 0.0
    %1113 = vmatprep.subr.mxu0 0.0
    %1114 = vmatpush1.msra.mxu0 0.0
    %1115 = vmatprep.subr.mxu0 0.0
    %1116 = vmatpush1.msra.mxu0 0.0
    %1117 = vmatprep.subr.mxu0 0.0
    %1118 = vmatpush1.msra.mxu0 0.0
    %1119 = vmatprep.subr.mxu0 0.0
    %1120 = vmatpush1.msra.mxu0 0.0
    %1121 = vmatprep.subr.mxu0 0.0
    %1122 = vmatpush1.msra.mxu0 0.0
    %1123 = vmatprep.subr.mxu0 0.0
    %1124 = vmatpush1.msra.mxu0 0.0
    %1125 = vmatprep.subr.mxu0 0.0
    %1126 = vmatpush1.msra.mxu0 0.0
    %1127 = vmatprep.subr.mxu0 0.0
    %1128 = vmatpush1.msra.mxu0 0.0
    %1129 = vmatprep.subr.mxu0 0.0
    %1130 = vmatpush1.msra.mxu0 0.0
    %1131 = vmatprep.subr.mxu0 0.0
    %1132 = vmatpush1.msra.mxu0 0.0
    %1133 = vmatprep.subr.mxu0 0.0
    %1134 = vmatpush1.msra.mxu0 0.0
    %1135 = vmatprep.subr.mxu0 0.0
    %1136 = vmatpush1.msra.mxu0 0.0
    %1137 = vmatprep.subr.mxu0 0.0
    %1138 = vmatpush1.msra.mxu0 0.0
    %1139 = vmatprep.subr.mxu0 0.0
    %1140 = vmatpush1.msra.mxu0 0.0
    %1141 = vmatprep.subr.mxu0 0.0
    %1142 = vmatpush1.msra.mxu0 0.0
    %1143 = vmatprep.subr.mxu0 0.0
    %1144 = vmatpush1.msra.mxu0 0.0
    %1145 = vmatprep.subr.mxu0 0.0
    %1146 = vmatpush1.msra.mxu0 0.0
    %1147 = vmatprep.mubr.f32.mxu0 0.0
    %1148 = vmatmul.mubr.f32.gmra.mrb[0].mxu0 %v1081
    %v1149 = vpop.f32.mrb[0].mxu0
    %v1150 = vadd.f32 0.0, %v1149
    %v1151 = vpop.f32.mrb[0].mxu0
    %1152 = vdwg.mxu0
    %1155 = vrot.lane.b32.xlu0 %v1074, 16
    %v1156 = vpop.permute.xlu0 %1155
    %1157 = vrot.lane.b32.xlu0 %v1150, 16
    %v1158 = vpop.permute.xlu0 %1157
    %vm1161 = vcmask 195712
    %1162 = vst.msk [vmem:[#allocation2] sm:$0xff] %vm1161, %v1156
    %1163 = vst.msk [vmem:[#allocation2 + $0x8] sm:$0xff] %vm1161, %v1158
    %1164 = vrot.lane.b32.xlu0 %v142, 104
    %v1165 = vpop.permute.xlu0 %1164
    %1166 = vrot.lane.b32.xlu0 %v142, 72
    %v1167 = vpop.permute.xlu0 %1166
    %v1168 = vsel %vm154, %v1165, 0
    %v1170 = vsel %vm154, %v1167, 0
    %1172 = vmatprep.subr.mxu0 0.0
    %1173 = vmatpush1.xpose.msra.mxu0 %v1170
    %1174 = vmatprep.subr.mxu0 0.0
    %1175 = vmatpush1.xpose.msra.mxu0 0.0
    %1176 = vmatprep.subr.mxu0 0.0
    %1177 = vmatpush1.xpose.msra.mxu0 0.0
    %1178 = vmatprep.subr.mxu0 0.0
    %1179 = vmatpush1.xpose.msra.mxu0 0.0
    %1180 = vmatprep.subr.mxu0 0.0
    %1181 = vmatpush1.xpose.msra.mxu0 0.0
    %1182 = vmatprep.subr.mxu0 0.0
    %1183 = vmatpush1.xpose.msra.mxu0 0.0
    %1184 = vmatprep.subr.mxu0 0.0
    %1185 = vmatpush1.xpose.msra.mxu0 0.0
    %1186 = vmatprep.subr.mxu0 0.0
    %1187 = vmatpush1.xpose.msra.mxu0 0.0
    %1188 = vmatprep.subr.mxu0 0.0
    %1189 = vmatpush1.xpose.msra.mxu0 0.0
    %1190 = vmatprep.subr.mxu0 0.0
    %1191 = vmatpush1.xpose.msra.mxu0 0.0
    %1192 = vmatprep.subr.mxu0 0.0
    %1193 = vmatpush1.xpose.msra.mxu0 0.0
    %1194 = vmatprep.subr.mxu0 0.0
    %1195 = vmatpush1.xpose.msra.mxu0 0.0
    %1196 = vmatprep.subr.mxu0 0.0
    %1197 = vmatpush1.xpose.msra.mxu0 0.0
    %1198 = vmatprep.subr.mxu0 0.0
    %1199 = vmatpush1.xpose.msra.mxu0 0.0
    %1200 = vmatprep.subr.mxu0 0.0
    %1201 = vmatpush1.xpose.msra.mxu0 0.0
    %1202 = vmatprep.subr.mxu0 0.0
    %1203 = vmatpush1.xpose.msra.mxu0 0.0
    %1204 = vmatprep.subr.mxu0 0.0
    %1205 = vmatpush1.xpose.msra.mxu0 0.0
    %1206 = vmatprep.subr.mxu0 0.0
    %1207 = vmatpush1.xpose.msra.mxu0 0.0
    %1208 = vmatprep.subr.mxu0 0.0
    %1209 = vmatpush1.xpose.msra.mxu0 0.0
    %1210 = vmatprep.subr.mxu0 0.0
    %1211 = vmatpush1.xpose.msra.mxu0 0.0
    %1212 = vmatprep.subr.mxu0 0.0
    %1213 = vmatpush1.xpose.msra.mxu0 0.0
    %1214 = vmatprep.subr.mxu0 0.0
    %1215 = vmatpush1.xpose.msra.mxu0 0.0
    %1216 = vmatprep.subr.mxu0 0.0
    %1217 = vmatpush1.xpose.msra.mxu0 0.0
    %1218 = vmatprep.subr.mxu0 0.0
    %1219 = vmatpush1.xpose.msra.mxu0 0.0
    %1220 = vmatprep.subr.mxu0 0.0
    %1221 = vmatpush1.xpose.msra.mxu0 0.0
    %1222 = vmatprep.subr.mxu0 0.0
    %1223 = vmatpush1.xpose.msra.mxu0 0.0
    %1224 = vmatprep.subr.mxu0 0.0
    %1225 = vmatpush1.xpose.msra.mxu0 0.0
    %1226 = vmatprep.subr.mxu0 0.0
    %1227 = vmatpush1.xpose.msra.mxu0 0.0
    %1228 = vmatprep.subr.mxu0 0.0
    %1229 = vmatpush1.xpose.msra.mxu0 0.0
    %1230 = vmatprep.subr.mxu0 0.0
    %1231 = vmatpush1.xpose.msra.mxu0 0.0
    %1232 = vmatprep.subr.mxu0 0.0
    %1233 = vmatpush1.xpose.msra.mxu0 0.0
    %1234 = vmatprep.subr.mxu0 0.0
    %1235 = vmatpush1.xpose.msra.mxu0 0.0
    %1236 = vmatprep.mubr.f32.mxu0 0.0
    %1237 = vmatmul.mubr.f32.gmra.mrb[0].mxu0 %v1168
    %v1238 = vpop.f32.mrb[0].mxu0
    %v1239 = vadd.f32 %v150, %v1238
    %v1240 = vpop.f32.mrb[0].mxu0
    %1241 = vdwg.mxu0
    %1242 = vrot.lane.b32.xlu0 %v147, 104
    %v1243 = vpop.permute.xlu0 %1242
    %1244 = vrot.lane.b32.xlu0 %v147, 72
    %v1245 = vpop.permute.xlu0 %1244
    %v1246 = vsel %vm154, %v1243, 0
    %v1248 = vsel %vm154, %v1245, 0
    %1250 = vmatprep.subr.mxu0 0.0
    %1251 = vmatpush1.xpose.msra.mxu0 %v1248
    %1252 = vmatprep.subr.mxu0 0.0
    %1253 = vmatpush1.xpose.msra.mxu0 0.0
    %1254 = vmatprep.subr.mxu0 0.0
    %1255 = vmatpush1.xpose.msra.mxu0 0.0
    %1256 = vmatprep.subr.mxu0 0.0
    %1257 = vmatpush1.xpose.msra.mxu0 0.0
    %1258 = vmatprep.subr.mxu0 0.0
    %1259 = vmatpush1.xpose.msra.mxu0 0.0
    %1260 = vmatprep.subr.mxu0 0.0
    %1261 = vmatpush1.xpose.msra.mxu0 0.0
    %1262 = vmatprep.subr.mxu0 0.0
    %1263 = vmatpush1.xpose.msra.mxu0 0.0
    %1264 = vmatprep.subr.mxu0 0.0
    %1265 = vmatpush1.xpose.msra.mxu0 0.0
    %1266 = vmatprep.subr.mxu0 0.0
    %1267 = vmatpush1.xpose.msra.mxu0 0.0
    %1268 = vmatprep.subr.mxu0 0.0
    %1269 = vmatpush1.xpose.msra.mxu0 0.0
    %1270 = vmatprep.subr.mxu0 0.0
    %1271 = vmatpush1.xpose.msra.mxu0 0.0
    %1272 = vmatprep.subr.mxu0 0.0
    %1273 = vmatpush1.xpose.msra.mxu0 0.0
    %1274 = vmatprep.subr.mxu0 0.0
    %1275 = vmatpush1.xpose.msra.mxu0 0.0
    %1276 = vmatprep.subr.mxu0 0.0
    %1277 = vmatpush1.xpose.msra.mxu0 0.0
    %1278 = vmatprep.subr.mxu0 0.0
    %1279 = vmatpush1.xpose.msra.mxu0 0.0
    %1280 = vmatprep.subr.mxu0 0.0
    %1281 = vmatpush1.xpose.msra.mxu0 0.0
    %1282 = vmatprep.subr.mxu0 0.0
    %1283 = vmatpush1.xpose.msra.mxu0 0.0
    %1284 = vmatprep.subr.mxu0 0.0
    %1285 = vmatpush1.xpose.msra.mxu0 0.0
    %1286 = vmatprep.subr.mxu0 0.0
    %1287 = vmatpush1.xpose.msra.mxu0 0.0
    %1288 = vmatprep.subr.mxu0 0.0
    %1289 = vmatpush1.xpose.msra.mxu0 0.0
    %1290 = vmatprep.subr.mxu0 0.0
    %1291 = vmatpush1.xpose.msra.mxu0 0.0
    %1292 = vmatprep.subr.mxu0 0.0
    %1293 = vmatpush1.xpose.msra.mxu0 0.0
    %1294 = vmatprep.subr.mxu0 0.0
    %1295 = vmatpush1.xpose.msra.mxu0 0.0
    %1296 = vmatprep.subr.mxu0 0.0
    %1297 = vmatpush1.xpose.msra.mxu0 0.0
    %1298 = vmatprep.subr.mxu0 0.0
    %1299 = vmatpush1.xpose.msra.mxu0 0.0
    %1300 = vmatprep.subr.mxu0 0.0
    %1301 = vmatpush1.xpose.msra.mxu0 0.0
    %1302 = vmatprep.subr.mxu0 0.0
    %1303 = vmatpush1.xpose.msra.mxu0 0.0
    %1304 = vmatprep.subr.mxu0 0.0
    %1305 = vmatpush1.xpose.msra.mxu0 0.0
    %1306 = vmatprep.subr.mxu0 0.0
    %1307 = vmatpush1.xpose.msra.mxu0 0.0
    %1308 = vmatprep.subr.mxu0 0.0
    %1309 = vmatpush1.xpose.msra.mxu0 0.0
    %1310 = vmatprep.subr.mxu0 0.0
    %1311 = vmatpush1.xpose.msra.mxu0 0.0
    %1312 = vmatprep.subr.mxu0 0.0
    %1313 = vmatpush1.xpose.msra.mxu0 0.0
    %1314 = vmatprep.mubr.f32.mxu0 0.0
    %1315 = vmatmul.mubr.f32.gmra.mrb[0].mxu0 %v1246
    %v1316 = vpop.f32.mrb[0].mxu0
    %v1317 = vadd.f32 %v150, %v1316
    %v1318 = vpop.f32.mrb[0].mxu0
    %1319 = vdwg.mxu0
    %v1320 = vsel %vm154, %v1239, -inf
    %1321 = vmax.xlane.f32.xlu0 %v1320
    %v1322 = vpop.xlane.xlu0 %1321
    %v1323 = vsel %vm154, %v1317, -inf
    %1324 = vmax.xlane.f32.xlu0 %v1323
    %v1325 = vpop.xlane.xlu0 %1324
    %v1326 = vsub.f32 %v1239, %v1322
    %v1327 = vsub.f32 %v1317, %v1325
    %v1328 = vmul.f32 %v1326, 1.442695
    %v1329 = vpow.pop %v1328
    %v1330 = vmul.f32 %v1327, 1.442695
    %v1331 = vpow.pop %v1330
    %v1332 = vsel %vm154, %v1329, 0.0
    %1333 = vadd.xlane.f32.xlu0 %v1332
    %v1334 = vpop.xlane.xlu0 %1333
    %v1335 = vsel %vm154, %v1331, 0.0
    %1336 = vadd.xlane.f32.xlu0 %v1335
    %v1337 = vpop.xlane.xlu0 %1336
    %v1338 = vrcp.pop %v1334
    %v1339 = vrcp.pop %v1337
    %v1340 = vmul.f32 %v1329, %v1338
    %v1341 = vmul.f32 %v1331, %v1339
    %1342 = vrot.lane.b32.xlu0 %v142, 40
    %v1343 = vpop.permute.xlu0 %1342
    %v1346 = vsel %vm154, %v1340, 0
    %1348 = vmatprep.subr.mxu0 0.0
    %1349 = vmatpush1.msra.mxu0 %v1343
    %1350 = vmatprep.subr.mxu0 0.0
    %1351 = vmatpush1.msra.mxu0 0.0
    %1352 = vmatprep.subr.mxu0 0.0
    %1353 = vmatpush1.msra.mxu0 0.0
    %1354 = vmatprep.subr.mxu0 0.0
    %1355 = vmatpush1.msra.mxu0 0.0
    %1356 = vmatprep.subr.mxu0 0.0
    %1357 = vmatpush1.msra.mxu0 0.0
    %1358 = vmatprep.subr.mxu0 0.0
    %1359 = vmatpush1.msra.mxu0 0.0
    %1360 = vmatprep.subr.mxu0 0.0
    %1361 = vmatpush1.msra.mxu0 0.0
    %1362 = vmatprep.subr.mxu0 0.0
    %1363 = vmatpush1.msra.mxu0 0.0
    %1364 = vmatprep.subr.mxu0 0.0
    %1365 = vmatpush1.msra.mxu0 0.0
    %1366 = vmatprep.subr.mxu0 0.0
    %1367 = vmatpush1.msra.mxu0 0.0
    %1368 = vmatprep.subr.mxu0 0.0
    %1369 = vmatpush1.msra.mxu0 0.0
    %1370 = vmatprep.subr.mxu0 0.0
    %1371 = vmatpush1.msra.mxu0 0.0
    %1372 = vmatprep.subr.mxu0 0.0
    %1373 = vmatpush1.msra.mxu0 0.0
    %1374 = vmatprep.subr.mxu0 0.0
    %1375 = vmatpush1.msra.mxu0 0.0
    %1376 = vmatprep.subr.mxu0 0.0
    %1377 = vmatpush1.msra.mxu0 0.0
    %1378 = vmatprep.subr.mxu0 0.0
    %1379 = vmatpush1.msra.mxu0 0.0
    %1380 = vmatprep.subr.mxu0 0.0
    %1381 = vmatpush1.msra.mxu0 0.0
    %1382 = vmatprep.subr.mxu0 0.0
    %1383 = vmatpush1.msra.mxu0 0.0
    %1384 = vmatprep.subr.mxu0 0.0
    %1385 = vmatpush1.msra.mxu0 0.0
    %1386 = vmatprep.subr.mxu0 0.0
    %1387 = vmatpush1.msra.mxu0 0.0
    %1388 = vmatprep.subr.mxu0 0.0
    %1389 = vmatpush1.msra.mxu0 0.0
    %1390 = vmatprep.subr.mxu0 0.0
    %1391 = vmatpush1.msra.mxu0 0.0
    %1392 = vmatprep.subr.mxu0 0.0
    %1393 = vmatpush1.msra.mxu0 0.0
    %1394 = vmatprep.subr.mxu0 0.0
    %1395 = vmatpush1.msra.mxu0 0.0
    %1396 = vmatprep.subr.mxu0 0.0
    %1397 = vmatpush1.msra.mxu0 0.0
    %1398 = vmatprep.subr.mxu0 0.0
    %1399 = vmatpush1.msra.mxu0 0.0
    %1400 = vmatprep.subr.mxu0 0.0
    %1401 = vmatpush1.msra.mxu0 0.0
    %1402 = vmatprep.subr.mxu0 0.0
    %1403 = vmatpush1.msra.mxu0 0.0
    %1404 = vmatprep.subr.mxu0 0.0
    %1405 = vmatpush1.msra.mxu0 0.0
    %1406 = vmatprep.subr.mxu0 0.0
    %1407 = vmatpush1.msra.mxu0 0.0
    %1408 = vmatprep.subr.mxu0 0.0
    %1409 = vmatpush1.msra.mxu0 0.0
    %1410 = vmatprep.subr.mxu0 0.0
    %1411 = vmatpush1.msra.mxu0 0.0
    %1412 = vmatprep.mubr.f32.mxu0 0.0
    %1413 = vmatmul.mubr.f32.gmra.mrb[0].mxu0 %v1346
    %v1414 = vpop.f32.mrb[0].mxu0
    %v1415 = vadd.f32 0.0, %v1414
    %v1416 = vpop.f32.mrb[0].mxu0
    %1417 = vdwg.mxu0
    %1418 = vrot.lane.b32.xlu0 %v147, 40
    %v1419 = vpop.permute.xlu0 %1418
    %v1422 = vsel %vm154, %v1341, 0
    %1424 = vmatprep.subr.mxu0 0.0
    %1425 = vmatpush1.msra.mxu0 %v1419
    %1426 = vmatprep.subr.mxu0 0.0
    %1427 = vmatpush1.msra.mxu0 0.0
    %1428 = vmatprep.subr.mxu0 0.0
    %1429 = vmatpush1.msra.mxu0 0.0
    %1430 = vmatprep.subr.mxu0 0.0
    %1431 = vmatpush1.msra.mxu0 0.0
    %1432 = vmatprep.subr.mxu0 0.0
    %1433 = vmatpush1.msra.mxu0 0.0
    %1434 = vmatprep.subr.mxu0 0.0
    %1435 = vmatpush1.msra.mxu0 0.0
    %1436 = vmatprep.subr.mxu0 0.0
    %1437 = vmatpush1.msra.mxu0 0.0
    %1438 = vmatprep.subr.mxu0 0.0
    %1439 = vmatpush1.msra.mxu0 0.0
    %1440 = vmatprep.subr.mxu0 0.0
    %1441 = vmatpush1.msra.mxu0 0.0
    %1442 = vmatprep.subr.mxu0 0.0
    %1443 = vmatpush1.msra.mxu0 0.0
    %1444 = vmatprep.subr.mxu0 0.0
    %1445 = vmatpush1.msra.mxu0 0.0
    %1446 = vmatprep.subr.mxu0 0.0
    %1447 = vmatpush1.msra.mxu0 0.0
    %1448 = vmatprep.subr.mxu0 0.0
    %1449 = vmatpush1.msra.mxu0 0.0
    %1450 = vmatprep.subr.mxu0 0.0
    %1451 = vmatpush1.msra.mxu0 0.0
    %1452 = vmatprep.subr.mxu0 0.0
    %1453 = vmatpush1.msra.mxu0 0.0
    %1454 = vmatprep.subr.mxu0 0.0
    %1455 = vmatpush1.msra.mxu0 0.0
    %1456 = vmatprep.subr.mxu0 0.0
    %1457 = vmatpush1.msra.mxu0 0.0
    %1458 = vmatprep.subr.mxu0 0.0
    %1459 = vmatpush1.msra.mxu0 0.0
    %1460 = vmatprep.subr.mxu0 0.0
    %1461 = vmatpush1.msra.mxu0 0.0
    %1462 = vmatprep.subr.mxu0 0.0
    %1463 = vmatpush1.msra.mxu0 0.0
    %1464 = vmatprep.subr.mxu0 0.0
    %1465 = vmatpush1.msra.mxu0 0.0
    %1466 = vmatprep.subr.mxu0 0.0
    %1467 = vmatpush1.msra.mxu0 0.0
    %1468 = vmatprep.subr.mxu0 0.0
    %1469 = vmatpush1.msra.mxu0 0.0
    %1470 = vmatprep.subr.mxu0 0.0
    %1471 = vmatpush1.msra.mxu0 0.0
    %1472 = vmatprep.subr.mxu0 0.0
    %1473 = vmatpush1.msra.mxu0 0.0
    %1474 = vmatprep.subr.mxu0 0.0
    %1475 = vmatpush1.msra.mxu0 0.0
    %1476 = vmatprep.subr.mxu0 0.0
    %1477 = vmatpush1.msra.mxu0 0.0
    %1478 = vmatprep.subr.mxu0 0.0
    %1479 = vmatpush1.msra.mxu0 0.0
    %1480 = vmatprep.subr.mxu0 0.0
    %1481 = vmatpush1.msra.mxu0 0.0
    %1482 = vmatprep.subr.mxu0 0.0
    %1483 = vmatpush1.msra.mxu0 0.0
    %1484 = vmatprep.subr.mxu0 0.0
    %1485 = vmatpush1.msra.mxu0 0.0
    %1486 = vmatprep.subr.mxu0 0.0
    %1487 = vmatpush1.msra.mxu0 0.0
    %1488 = vmatprep.mubr.f32.mxu0 0.0
    %1489 = vmatmul.mubr.f32.gmra.mrb[0].mxu0 %v1422
    %v1490 = vpop.f32.mrb[0].mxu0
    %v1491 = vadd.f32 0.0, %v1490
    %v1492 = vpop.f32.mrb[0].mxu0
    %1493 = vdwg.mxu0
    %1496 = vrot.lane.b32.xlu0 %v1415, 24
    %v1497 = vpop.permute.xlu0 %1496
    %1498 = vrot.lane.b32.xlu0 %v1491, 24
    %v1499 = vpop.permute.xlu0 %1498
    %vm1502 = vcmask 261312
    %1503 = vst.msk [vmem:[#allocation2] sm:$0xff] %vm1502, %v1497
    %1504 = vst.msk [vmem:[#allocation2 + $0x8] sm:$0xff] %vm1502, %v1499
    %v1505 = vld [vmem:[#allocation2] sm:$0xff]
    %v1506 = vld [vmem:[#allocation2 + $0x8] sm:$0xff]
    %v1507 = vld [vmem:[#allocation8] sm:$0xff]
    %v1508 = vld [vmem:[#allocation8 + $0x8] sm:$0xff]
    %v1509 = vld [vmem:[#allocation8 + $0x10] sm:$0xff]
    %v1510 = vld [vmem:[#allocation8 + $0x18] sm:$0xff]
    %v1511 = vld [vmem:[%s3] sm:$0x1]
    %v1513 = vlaneseq
    %v1514 = vshrl.u32 %v1513, 7
    %v1515 = vsub.s32 0, %v1514
    %v1516 = vrot.slane %v1511, %v1515
    %v1519 = vsel %vm68, %v1505, 0
    %v1522 = vsel %vm68, %v1506, 0
    %1524 = vmatprep.subr.mxu0 0.0
    %1525 = vmatpush1.msra.mxu0 %v1507
    %1526 = vmatprep.subr.mxu0 0.0
    %1527 = vmatpush1.msra.mxu0 %v1508
    %1528 = vmatprep.subr.mxu0 0.0
    %1529 = vmatpush1.msra.mxu0 %v1509
    %1530 = vmatprep.subr.mxu0 0.0
    %1531 = vmatpush1.msra.mxu0 %v1510
    %1532 = vmatprep.subr.mxu0 0.0
    %1533 = vmatpush1.msra.mxu0 0.0
    %1534 = vmatprep.subr.mxu0 0.0
    %1535 = vmatpush1.msra.mxu0 0.0
    %1536 = vmatprep.subr.mxu0 0.0
    %1537 = vmatpush1.msra.mxu0 0.0
    %1538 = vmatprep.subr.mxu0 0.0
    %1539 = vmatpush1.msra.mxu0 0.0
    %1540 = vmatprep.subr.mxu0 0.0
    %1541 = vmatpush1.msra.mxu0 0.0
    %1542 = vmatprep.subr.mxu0 0.0
    %1543 = vmatpush1.msra.mxu0 0.0
    %1544 = vmatprep.subr.mxu0 0.0
    %1545 = vmatpush1.msra.mxu0 0.0
    %1546 = vmatprep.subr.mxu0 0.0
    %1547 = vmatpush1.msra.mxu0 0.0
    %1548 = vmatprep.subr.mxu0 0.0
    %1549 = vmatpush1.msra.mxu0 0.0
    %1550 = vmatprep.subr.mxu0 0.0
    %1551 = vmatpush1.msra.mxu0 0.0
    %1552 = vmatprep.subr.mxu0 0.0
    %1553 = vmatpush1.msra.mxu0 0.0
    %1554 = vmatprep.subr.mxu0 0.0
    %1555 = vmatpush1.msra.mxu0 0.0
    %1556 = vmatprep.subr.mxu0 0.0
    %1557 = vmatpush1.msra.mxu0 0.0
    %1558 = vmatprep.subr.mxu0 0.0
    %1559 = vmatpush1.msra.mxu0 0.0
    %1560 = vmatprep.subr.mxu0 0.0
    %1561 = vmatpush1.msra.mxu0 0.0
    %1562 = vmatprep.subr.mxu0 0.0
    %1563 = vmatpush1.msra.mxu0 0.0
    %1564 = vmatprep.subr.mxu0 0.0
    %1565 = vmatpush1.msra.mxu0 0.0
    %1566 = vmatprep.subr.mxu0 0.0
    %1567 = vmatpush1.msra.mxu0 0.0
    %1568 = vmatprep.subr.mxu0 0.0
    %1569 = vmatpush1.msra.mxu0 0.0
    %1570 = vmatprep.subr.mxu0 0.0
    %1571 = vmatpush1.msra.mxu0 0.0
    %1572 = vmatprep.subr.mxu0 0.0
    %1573 = vmatpush1.msra.mxu0 0.0
    %1574 = vmatprep.subr.mxu0 0.0
    %1575 = vmatpush1.msra.mxu0 0.0
    %1576 = vmatprep.subr.mxu0 0.0
    %1577 = vmatpush1.msra.mxu0 0.0
    %1578 = vmatprep.subr.mxu0 0.0
    %1579 = vmatpush1.msra.mxu0 0.0
    %1580 = vmatprep.subr.mxu0 0.0
    %1581 = vmatpush1.msra.mxu0 0.0
    %1582 = vmatprep.subr.mxu0 0.0
    %1583 = vmatpush1.msra.mxu0 0.0
    %1584 = vmatprep.subr.mxu0 0.0
    %1585 = vmatpush1.msra.mxu0 0.0
    %1586 = vmatprep.subr.mxu0 0.0
    %1587 = vmatpush1.msra.mxu0 0.0
    %1588 = vmatprep.mubr.f32.mxu0 0.0
    %1589 = vmatmul.mubr.f32.gmra.mrb[0].mxu0 %v1519
    %v1590 = vpop.f32.mrb[0].mxu0
    %v1591 = vadd.f32 %v1516, %v1590
    %v1592 = vpop.f32.mrb[0].mxu0
    %1593 = vmatprep.mubr.f32.mxu0 0.0
    %1594 = vmatmul.mubr.f32.gmra.mrb[0].mxu0 %v1522
    %v1595 = vpop.f32.mrb[0].mxu0
    %v1596 = vadd.f32 %v1516, %v1595
    %v1597 = vpop.f32.mrb[0].mxu0
    %1598 = vdwg.mxu0
    %1599 = vst.msk [vmem:[#allocation9] sm:$0xff] %vm68, %v1591
    %1600 = vst.msk [vmem:[#allocation9 + $0x8] sm:$0xff] %vm68, %v1596
    // Predicated region
    $region34: #{tpu_custom_call.1} parent=1 // pred_check
      _
    $region35: #{tpu_custom_call.1} parent=1 // pred_check_branch
      %1602 = sbr.rel (0) target = $region37
    $region36: #{tpu_custom_call.1} parent=1 // pred_region
      %s1604 = ssub.s32 256, 256
      %1605 = vsyncadd [#allocation5], %s1604
      %s1606 = sshll.u32 [#allocation9], 4
      %s1607 = int_to_ptr.vmem [resolvable:$true] %s1606
      %1612 = dma.vmem_to_hbm [thread:$0]  %s1607, 256, %s5, [#allocation5], 128, 128, 8
    $region37: #{tpu_custom_call.1} parent=1 // pred_fallthru
      _
    // Predicated region
    $region38: #{tpu_custom_call.1} parent=1 // pred_check
      _
    $region39: #{tpu_custom_call.1} parent=1 // pred_check_branch
      %1614 = sbr.rel (0) target = $region41
    $region40: #{tpu_custom_call.1} parent=1 // pred_region
      %1615 = dma.done [#allocation5], 256
    $region41: #{tpu_custom_call.1} parent=1 // pred_fallthru
      _
    %1616 = vsyncpa [#allocation4], 1
    %1617 = vsyncpa [#allocation7], 1
    %1618 = vsyncpa [#allocation5], 1

</llo_original>
